<compile_context>
chip_gen: v5e
topology: v5e:2x2
jax: 0.10.0
libtpu: 0.0.40
codegen_flags: <defaults>
</compile_context>

<pallas_src>
import functools

import jax
import jax.numpy as jnp
from jax.experimental import pallas as pl
from jax.experimental.pallas import tpu as pltpu


MATMUL_DTYPE = jnp.bfloat16   # MXU input dtype (accumulation stays fp32)
LN_EPS = 1e-5                 # PyTorch LayerNorm default


# ----------------------------- in-kernel math helpers -----------------------------

def _erf(x):
    # Abramowitz & Stegun 7.1.26 polynomial approximation of erf (fp32, ~1.5e-7 abs err).
    a1, a2, a3, a4, a5 = 0.254829592, -0.284496736, 1.421413741, -1.453152027, 1.061405429
    pc = 0.3275911
    ax = jnp.abs(x)
    t = 1.0 / (1.0 + pc * ax)
    poly = ((((a5 * t + a4) * t + a3) * t + a2) * t + a1) * t
    y = 1.0 - poly * jnp.exp(-ax * ax)
    return jnp.where(x >= 0.0, y, -y)


def _gelu(x):
    # exact (erf-based) GELU, matching torch.nn.GELU() default
    return 0.5 * x * (1.0 + _erf(x * 0.7071067811865476))


def _layernorm(x, w, b, eps=LN_EPS):
    mu = jnp.mean(x, axis=-1, keepdims=True)
    xc = x - mu
    var = jnp.mean(xc * xc, axis=-1, keepdims=True)
    return xc * jax.lax.rsqrt(var + eps) * w + b


# ----------------------------- the fused ViT kernel -----------------------------

def _vit_kernel(
    # constant-index inputs (fetched once, VMEM-resident for the whole grid)
    patches_ref, proj_w_ref, addend_ref, head_blk_ref, norm_ref, fc_w_ref, fc_b_ref,
    # per-layer streamed inputs (auto double-buffered by BlockSpec pipelining)
    wqkv_ref, wo_ref, w1_ref, b1_ref, w2_ref, lvec_ref,
    # output
    logits_ref,
    # scratch (persist across grid steps)
    h_sc, qa_sc, k_sc, v_sc,
    *, B, S, num_heads, head_dim, cd):
    E = num_heads * head_dim
    M = B * S
    scale = 1.0 / float(head_dim) ** 0.5
    layer = pl.program_id(0)

    def lvec(r):      # packed per-layer vectors: [bq, bk, bv, bo, ln1w, ln1b, b2, ln2w, ln2b]
        return lvec_ref[pl.ds(r, 1), :]

    # -------- prologue (first grid step): patch embed + cls token + positional add --------
    # patches_ref has a zero row at every cls position, so one dense matmul + one dense
    # (M, E) store builds the whole token matrix (addend carries proj bias / cls / pos).
    @pl.when(layer == 0)
    def _embed():
        h_sc[...] = jnp.dot(patches_ref[...], proj_w_ref[...],
                            preferred_element_type=jnp.float32) + addend_ref[...]

    # -------- transformer encoder layer (every grid step) --------
    h = h_sc[...]                                   # (M, E) fp32, b-major rows
    hx = h.astype(cd)

    # fused QKV projection: one (M,E)x(E,3E) MXU matmul, lane-sliced into Q/K/V.
    qkv = jnp.dot(hx, wqkv_ref[...], preferred_element_type=jnp.float32)   # (M, 3E)
    qa_sc[...] = (qkv[:, 0:E] + lvec(0)) * scale
    k_sc[...] = qkv[:, E:2 * E] + lvec(1)
    v_sc[...] = qkv[:, 2 * E:3 * E] + lvec(2)

    hb = head_blk_ref[...]                          # (E, E) block-diagonal head selector (cd)

    # attention over the BATCH dimension (seq len = B), faithful to the reference's
    # batch_first=False usage of nn.MultiheadAttention.  (q_i * k_j) @ head_blk gives the
    # per-(token, head) score broadcast across that head's lanes -> no reshape/transpose.
    # The attention output for image i overwrites its q rows in qa_sc (no attn scratch).
    for i in range(B):
        q_i = qa_sc[pl.ds(i * S, S), :]                                    # (S, E)
        sc = [jnp.dot((q_i * k_sc[pl.ds(j * S, S), :]).astype(cd), hb,
                      preferred_element_type=jnp.float32) for j in range(B)]
        m = sc[0]
        for j in range(1, B):
            m = jnp.maximum(m, sc[j])
        es = [jnp.exp(t - m) for t in sc]
        denom = es[0]
        for j in range(1, B):
            denom = denom + es[j]
        inv = 1.0 / denom
        o_i = (es[0] * inv) * v_sc[pl.ds(0, S), :]
        for j in range(1, B):
            o_i = o_i + (es[j] * inv) * v_sc[pl.ds(j * S, S), :]
        qa_sc[pl.ds(i * S, S), :] = o_i

    # out-projection, residual + LayerNorm1
    attn_out = jnp.dot(qa_sc[...].astype(cd), wo_ref[...],
                       preferred_element_type=jnp.float32) + lvec(3)
    h1 = _layernorm(h + attn_out, lvec(4), lvec(5))

    # MLP: Linear -> exact GELU -> Linear, residual + LayerNorm2
    m1 = jnp.dot(h1.astype(cd), w1_ref[...],
                 preferred_element_type=jnp.float32) + b1_ref[...]
    m1 = _gelu(m1)
    m2 = jnp.dot(m1.astype(cd), w2_ref[...],
                 preferred_element_type=jnp.float32) + lvec(6)
    h2 = _layernorm(h1 + m2, lvec(7), lvec(8))
    h_sc[...] = h2

    # -------- epilogue (last grid step): final LayerNorm on cls rows + classifier --------
    @pl.when(layer == pl.num_programs(0) - 1)
    def _head():
        # gather the B cls rows (row b*S) with an exact 0/1 selector matmul -> dense store
        sel = (jax.lax.broadcasted_iota(jnp.int32, (B, M), 1) ==
               S * jax.lax.broadcasted_iota(jnp.int32, (B, M), 0)).astype(jnp.float32)
        cls_rows = jnp.dot(sel, h2, preferred_element_type=jnp.float32)    # (B, E), exact
        y = _layernorm(cls_rows, norm_ref[pl.ds(0, 1), :], norm_ref[pl.ds(1, 1), :])
        logits = jnp.dot(y.astype(cd), fc_w_ref[...],
                         preferred_element_type=jnp.float32) + fc_b_ref[...]
        logits_ref[...] = logits.astype(logits_ref.dtype)


# ----------------------------- ViT forward (wrapper) -----------------------------

def vit_forward(x, params, cfg):
    B, C, H, W = x.shape
    p = cfg["patch_size"]
    E, Hh, hid = cfg["embed_dim"], cfg["num_heads"], cfg["hidden_dim"]
    L, ncls = cfg["num_layers"], cfg["num_classes"]
    Hp, Wp = H // p, W // p
    Np = Hp * Wp
    S = Np + 1
    M = B * S
    K = C * p * p
    d = E // Hh

    # ---- layout plumbing (im2col + parameter prep; the matmuls happen in the kernel) ----
    # Conv2d(kernel=stride=p) == im2col.
    patches = (x.reshape(B, C, Hp, p, Wp, p)
                .transpose(0, 2, 4, 1, 3, 5)
                .reshape(B, Np, K))
    # Zero row at each cls position -> the embed matmul directly yields the (M, E) tokens.
    patches_full = jnp.concatenate(
        [jnp.zeros((B, 1, K), patches.dtype), patches], axis=1
    ).reshape(M, K).astype(MATMUL_DTYPE)
    # Additive term (fp32): cls rows get cls_token + pos[0]; patch rows get proj_b + pos[1+p].
    addend = jnp.tile(
        jnp.concatenate([params["cls"] + params["pos"][0:1],
                         params["proj_b"] + params["pos"][1:]], axis=0),
        (B, 1))                                                            # (M, E)
    # Block-diagonal head selector, hoisted out of the per-layer body (constant input).
    head_ids = jnp.arange(E, dtype=jnp.int32) // d
    head_blk = (head_ids[:, None] == head_ids[None, :]).astype(MATMUL_DTYPE)

    consts = (patches_full, params["proj_w"], addend, head_blk,
              params["norm_vecs"], params["fc_w"], params["fc_b"])
    layers = (params["wqkv"], params["wo"], params["w1"], params["b1"],
              params["w2"], params["lvec"])

    def const_spec(a):
        return pl.BlockSpec(a.shape, lambda l, _n=a.ndim: (0,) * _n)

    def layer_spec(a):
        return pl.BlockSpec((None,) + tuple(a.shape[1:]), lambda l: (l, 0, 0))

    kernel = functools.partial(_vit_kernel, B=B, S=S, num_heads=Hh, head_dim=d,
                               cd=MATMUL_DTYPE)

    # Advisory cost estimate for the XLA scheduler.
    layer_flops = (2 * M * E * 3 * E            # fused QKV projection
                   + 2 * B * B * S * E * E      # attention scores (head-selector matmuls)
                   + 4 * B * B * S * E          # softmax weighting + V accumulation
                   + 2 * M * E * E              # out-projection
                   + 4 * M * E * hid)           # MLP
    flops = L * layer_flops + 2 * M * K * E + 2 * B * E * ncls
    transcendentals = L * (B * B * S * E + M * hid)
    wbytes = params["wqkv"].dtype.itemsize
    layer_bytes = (3 * E * E + E * E + 2 * E * hid) * wbytes + (9 * E + hid) * 4
    bytes_accessed = (L * layer_bytes
                      + (M * K + K * E + E * E + E * ncls) * wbytes
                      + (M * E + 2 * E + ncls + B * ncls) * 4)

    # TODO(synk): megacore "parallel" row-split (v7x second TensorCore) omitted — attention
    #   couples rows only through the batch dim and the toy activation (34x32) is a single
    #   VMEM block, so the layer axis stays a sequential "arbitrary" carry.
    return pl.pallas_call(
        kernel,
        grid=(L,),
        out_shape=jax.ShapeDtypeStruct((B, ncls), jnp.float32),
        in_specs=[const_spec(a) for a in consts] + [layer_spec(a) for a in layers],
        out_specs=pl.BlockSpec((B, ncls), lambda l: (0, 0)),
        scratch_shapes=[pltpu.VMEM((M, E), jnp.float32)] * 4,   # h carry, q/attn, k, v
        compiler_params=pltpu.CompilerParams(
            dimension_semantics=("arbitrary",),
            vmem_limit_bytes=32 * 1024 * 1024),
        cost_estimate=pl.CostEstimate(flops=int(flops),
                                      transcendentals=int(transcendentals),
                                      bytes_accessed=int(bytes_accessed)),
    )(*consts, *layers)


# ----------------------------- deterministic parameter init -----------------------------

def init_params(key, cfg):
    C, p = cfg["in_channels"], cfg["patch_size"]
    E, hid = cfg["embed_dim"], cfg["hidden_dim"]
    L, ncls = cfg["num_layers"], cfg["num_classes"]
    S = (cfg["img_size"] // p) ** 2 + 1
    K = C * p * p

    keys = iter(jax.random.split(key, 16))

    def nrm(shape, s=0.02, dtype=MATMUL_DTYPE):
        return (s * jax.random.normal(next(keys), shape, jnp.float32)).astype(dtype)

    zeros = lambda shape: jnp.zeros(shape, jnp.float32)
    ones = lambda shape: jnp.ones(shape, jnp.float32)

    # Packed per-layer vectors (fp32): rows = [bq, bk, bv, bo, ln1_w, ln1_b, b2, ln2_w, ln2_b]
    lvec = jnp.stack([zeros((L, E)), zeros((L, E)), zeros((L, E)), zeros((L, E)),
                      ones((L, E)), zeros((L, E)),
                      zeros((L, E)), ones((L, E)), zeros((L, E))], axis=1)

    # Matmul weights pre-transposed to (in, out) and stored in MATMUL_DTYPE (streamed as bf16);
    # QKV fused along the output dim.  LayerNorm/bias vectors stay fp32.
    return {
        "proj_w": nrm((K, E)), "proj_b": zeros((1, E)),
        "cls": nrm((1, E), 1.0, jnp.float32), "pos": nrm((S, E), 1.0, jnp.float32),
        "norm_vecs": jnp.concatenate([ones((1, E)), zeros((1, E))], axis=0),   # [norm_w; norm_b]
        "fc_w": nrm((E, ncls)), "fc_b": zeros((1, ncls)),
        "wqkv": nrm((L, E, 3 * E)), "wo": nrm((L, E, E)),
        "w1": nrm((L, E, hid)), "b1": zeros((L, 1, hid)),
        "w2": nrm((L, hid, E)),
        "lvec": lvec,
    }


# ----------------------------- main -----------------------------

if __name__ == "__main__":
    cfg = dict(
        img_size=16, patch_size=4, in_channels=3, num_classes=8,
        embed_dim=32, num_heads=4, hidden_dim=64, num_layers=2, dropout=0.1,
    )
    key = jax.random.PRNGKey(0)
    pkey, xkey = jax.random.split(key)
    params = init_params(pkey, cfg)
    x = jax.random.normal(
        xkey, (2, cfg["in_channels"], cfg["img_size"], cfg["img_size"]), jnp.float32
    )

    fwd = jax.jit(lambda xx, pp: vit_forward(xx, pp, cfg))
    logits = fwd(x, params)
    jax.block_until_ready(logits)
    assert logits.shape == (2, cfg["num_classes"]), logits.shape
    assert bool(jnp.all(jnp.isfinite(logits)))
    # TODO(synk): dropout layers are identity (eval-mode forward semantics).
    print("KERNEL_OK")
</pallas_src>

<mosaic_0001>
module attributes {stable_mosaic.version = 11 : i64} {
  func.func @_vit_kernel(%arg0: i32, %arg1: memref<34x48xbf16, #tpu.memory_space<vmem>>, %arg2: memref<48x32xbf16, #tpu.memory_space<vmem>>, %arg3: memref<34x32xf32, #tpu.memory_space<vmem>>, %arg4: memref<32x32xbf16, #tpu.memory_space<vmem>>, %arg5: memref<2x32xf32, #tpu.memory_space<vmem>>, %arg6: memref<32x8xbf16, #tpu.memory_space<vmem>>, %arg7: memref<1x8xf32, #tpu.memory_space<vmem>>, %arg8: memref<1x32x96xbf16, #tpu.memory_space<vmem>>, %arg9: memref<1x32x32xbf16, #tpu.memory_space<vmem>>, %arg10: memref<1x32x64xbf16, #tpu.memory_space<vmem>>, %arg11: memref<1x1x64xf32, #tpu.memory_space<vmem>>, %arg12: memref<1x64x32xbf16, #tpu.memory_space<vmem>>, %arg13: memref<1x9x32xf32, #tpu.memory_space<vmem>>, %arg14: memref<2x8xf32, #tpu.memory_space<vmem>>, %arg15: memref<34x32xf32, #tpu.memory_space<vmem>>, %arg16: memref<34x32xf32, #tpu.memory_space<vmem>>, %arg17: memref<34x32xf32, #tpu.memory_space<vmem>>, %arg18: memref<34x32xf32, #tpu.memory_space<vmem>>) attributes {dimension_semantics = [#tpu.dimension_semantics<arbitrary>], iteration_bounds = array<i64: 2>, scalar_prefetch = 0 : i64, scratch_operands = 4 : i64, tpu.core_type = #tpu.core_type<tc>, window_params = [{pipeline_mode = #tpu.pipeline_mode<synchronous>, transform_indices = @transform_0, window_bounds = array<i64: 34, 48>}, {pipeline_mode = #tpu.pipeline_mode<synchronous>, transform_indices = @transform_1, window_bounds = array<i64: 48, 32>}, {pipeline_mode = #tpu.pipeline_mode<synchronous>, transform_indices = @transform_2, window_bounds = array<i64: 34, 32>}, {pipeline_mode = #tpu.pipeline_mode<synchronous>, transform_indices = @transform_3, window_bounds = array<i64: 32, 32>}, {pipeline_mode = #tpu.pipeline_mode<synchronous>, transform_indices = @transform_4, window_bounds = array<i64: 2, 32>}, {pipeline_mode = #tpu.pipeline_mode<synchronous>, transform_indices = @transform_5, window_bounds = array<i64: 32, 8>}, {pipeline_mode = #tpu.pipeline_mode<synchronous>, transform_indices = @transform_6, window_bounds = array<i64: 1, 8>}, {transform_indices = @transform_7, window_bounds = array<i64: 1, 32, 96>}, {transform_indices = @transform_8, window_bounds = array<i64: 1, 32, 32>}, {transform_indices = @transform_9, window_bounds = array<i64: 1, 32, 64>}, {transform_indices = @transform_10, window_bounds = array<i64: 1, 1, 64>}, {transform_indices = @transform_11, window_bounds = array<i64: 1, 64, 32>}, {transform_indices = @transform_12, window_bounds = array<i64: 1, 9, 32>}, {pipeline_mode = #tpu.pipeline_mode<synchronous>, transform_indices = @transform_13, window_bounds = array<i64: 2, 8>}]} {
    %c0_i32 = arith.constant 0 : i32
    %0 = arith.cmpi eq, %arg0, %c0_i32 : i32
    %1 = arith.extui %0 : i1 to i32
    %c0_i32_0 = arith.constant 0 : i32
    %2 = arith.cmpi ne, %1, %c0_i32_0 : i32
    scf.if %2 {
      %c0_107 = arith.constant 0 : index
      %c0_108 = arith.constant 0 : index
      %198 = vector.load %arg1[%c0_107, %c0_108] : memref<34x48xbf16, #tpu.memory_space<vmem>>, vector<34x48xbf16>
      %c0_109 = arith.constant 0 : index
      %c0_110 = arith.constant 0 : index
      %199 = vector.load %arg2[%c0_109, %c0_110] : memref<48x32xbf16, #tpu.memory_space<vmem>>, vector<48x32xbf16>
      %cst_111 = arith.constant dense<0.000000e+00> : vector<34x32xf32>
      %200 = tpu.matmul %198, %199, %cst_111 {dimension_numbers = #tpu.dot_dimension_numbers<[1], [0], [0], [1], [0, 0, 1, 1], [], []>} : vector<34x48xbf16>, vector<48x32xbf16>, vector<34x32xf32> -> vector<34x32xf32>
      %c0_112 = arith.constant 0 : index
      %c0_113 = arith.constant 0 : index
      %201 = vector.load %arg3[%c0_112, %c0_113] : memref<34x32xf32, #tpu.memory_space<vmem>>, vector<34x32xf32>
      %202 = arith.addf %200, %201 : vector<34x32xf32>
      %c0_114 = arith.constant 0 : index
      %c0_115 = arith.constant 0 : index
      %203 = vector.load %arg15[%c0_114, %c0_115] : memref<34x32xf32, #tpu.memory_space<vmem>>, vector<34x32xf32>
      tpu.vector_store %arg15[%c0_114, %c0_115], %202 {strides = array<i32>} : memref<34x32xf32, #tpu.memory_space<vmem>>, vector<34x32xf32>,
    } else {
    }
    %c0 = arith.constant 0 : index
    %c0_1 = arith.constant 0 : index
    %3 = vector.load %arg15[%c0, %c0_1] : memref<34x32xf32, #tpu.memory_space<vmem>>, vector<34x32xf32>
    %4 = arith.truncf %3 : vector<34x32xf32> to vector<34x32xbf16>
    %c0_2 = arith.constant 0 : index
    %c0_3 = arith.constant 0 : index
    %c0_4 = arith.constant 0 : index
    %5 = vector.load %arg8[%c0_2, %c0_3, %c0_4] : memref<1x32x96xbf16, #tpu.memory_space<vmem>>, vector<1x32x96xbf16>
    %6 = vector.shape_cast %5 : vector<1x32x96xbf16> to vector<32x96xbf16>
    %cst = arith.constant dense<0.000000e+00> : vector<34x96xf32>
    %7 = tpu.matmul %4, %6, %cst {dimension_numbers = #tpu.dot_dimension_numbers<[1], [0], [0], [1], [0, 0, 1, 1], [], []>} : vector<34x32xbf16>, vector<32x96xbf16>, vector<34x96xf32> -> vector<34x96xf32>
    %8 = vector.extract_strided_slice %7 {offsets = [0, 0], sizes = [34, 32], strides = [1, 1]} : vector<34x96xf32> to vector<34x32xf32>
    %c0_5 = arith.constant 0 : index
    %c0_6 = arith.constant 0 : index
    %c0_7 = arith.constant 0 : index
    %9 = vector.load %arg13[%c0_5, %c0_6, %c0_7] : memref<1x9x32xf32, #tpu.memory_space<vmem>>, vector<1x1x32xf32>
    %10 = vector.shape_cast %9 : vector<1x1x32xf32> to vector<1x32xf32>
    %11 = vector.broadcast %10 : vector<1x32xf32> to vector<34x32xf32>
    %12 = arith.addf %8, %11 : vector<34x32xf32>
    %cst_8 = arith.constant 0.353553385 : f32
    %13 = vector.broadcast %cst_8 : f32 to vector<34x32xf32>
    %14 = arith.mulf %12, %13 : vector<34x32xf32>
    %c0_9 = arith.constant 0 : index
    %c0_10 = arith.constant 0 : index
    %15 = vector.load %arg16[%c0_9, %c0_10] : memref<34x32xf32, #tpu.memory_space<vmem>>, vector<34x32xf32>
    tpu.vector_store %arg16[%c0_9, %c0_10], %14 {strides = array<i32>} : memref<34x32xf32, #tpu.memory_space<vmem>>, vector<34x32xf32>,
    %16 = vector.extract_strided_slice %7 {offsets = [0, 32], sizes = [34, 32], strides = [1, 1]} : vector<34x96xf32> to vector<34x32xf32>
    %c0_11 = arith.constant 0 : index
    %c1 = arith.constant 1 : index
    %c0_12 = arith.constant 0 : index
    %17 = vector.load %arg13[%c0_11, %c1, %c0_12] : memref<1x9x32xf32, #tpu.memory_space<vmem>>, vector<1x1x32xf32>
    %18 = vector.shape_cast %17 : vector<1x1x32xf32> to vector<1x32xf32>
    %19 = vector.broadcast %18 : vector<1x32xf32> to vector<34x32xf32>
    %20 = arith.addf %16, %19 : vector<34x32xf32>
    %c0_13 = arith.constant 0 : index
    %c0_14 = arith.constant 0 : index
    %21 = vector.load %arg17[%c0_13, %c0_14] : memref<34x32xf32, #tpu.memory_space<vmem>>, vector<34x32xf32>
    tpu.vector_store %arg17[%c0_13, %c0_14], %20 {strides = array<i32>} : memref<34x32xf32, #tpu.memory_space<vmem>>, vector<34x32xf32>,
    %22 = vector.extract_strided_slice %7 {offsets = [0, 64], sizes = [34, 32], strides = [1, 1]} : vector<34x96xf32> to vector<34x32xf32>
    %c0_15 = arith.constant 0 : index
    %c2 = arith.constant 2 : index
    %c0_16 = arith.constant 0 : index
    %23 = vector.load %arg13[%c0_15, %c2, %c0_16] : memref<1x9x32xf32, #tpu.memory_space<vmem>>, vector<1x1x32xf32>
    %24 = vector.shape_cast %23 : vector<1x1x32xf32> to vector<1x32xf32>
    %25 = vector.broadcast %24 : vector<1x32xf32> to vector<34x32xf32>
    %26 = arith.addf %22, %25 : vector<34x32xf32>
    %c0_17 = arith.constant 0 : index
    %c0_18 = arith.constant 0 : index
    %27 = vector.load %arg18[%c0_17, %c0_18] : memref<34x32xf32, #tpu.memory_space<vmem>>, vector<34x32xf32>
    tpu.vector_store %arg18[%c0_17, %c0_18], %26 {strides = array<i32>} : memref<34x32xf32, #tpu.memory_space<vmem>>, vector<34x32xf32>,
    %c0_19 = arith.constant 0 : index
    %c0_20 = arith.constant 0 : index
    %28 = vector.load %arg4[%c0_19, %c0_20] : memref<32x32xbf16, #tpu.memory_space<vmem>>, vector<32x32xbf16>
    %c0_21 = arith.constant 0 : index
    %c0_22 = arith.constant 0 : index
    %29 = vector.load %arg16[%c0_21, %c0_22] : memref<34x32xf32, #tpu.memory_space<vmem>>, vector<17x32xf32>
    %c0_23 = arith.constant 0 : index
    %c0_24 = arith.constant 0 : index
    %30 = vector.load %arg17[%c0_23, %c0_24] : memref<34x32xf32, #tpu.memory_space<vmem>>, vector<17x32xf32>
    %31 = arith.mulf %29, %30 : vector<17x32xf32>
    %32 = arith.truncf %31 : vector<17x32xf32> to vector<17x32xbf16>
    %cst_25 = arith.constant dense<0.000000e+00> : vector<17x32xf32>
    %33 = tpu.matmul %32, %28, %cst_25 {dimension_numbers = #tpu.dot_dimension_numbers<[1], [0], [0], [1], [0, 0, 1, 1], [], []>} : vector<17x32xbf16>, vector<32x32xbf16>, vector<17x32xf32> -> vector<17x32xf32>
    %c17 = arith.constant 17 : index
    %c0_26 = arith.constant 0 : index
    %34 = vector.load %arg17[%c17, %c0_26] : memref<34x32xf32, #tpu.memory_space<vmem>>, vector<17x32xf32>
    %35 = arith.mulf %29, %34 : vector<17x32xf32>
    %36 = arith.truncf %35 : vector<17x32xf32> to vector<17x32xbf16>
    %cst_27 = arith.constant dense<0.000000e+00> : vector<17x32xf32>
    %37 = tpu.matmul %36, %28, %cst_27 {dimension_numbers = #tpu.dot_dimension_numbers<[1], [0], [0], [1], [0, 0, 1, 1], [], []>} : vector<17x32xbf16>, vector<32x32xbf16>, vector<17x32xf32> -> vector<17x32xf32>
    %38 = arith.maximumf %33, %37 : vector<17x32xf32>
    %39 = arith.subf %33, %38 : vector<17x32xf32>
    %40 = math.exp %39 : vector<17x32xf32>
    %41 = arith.subf %37, %38 : vector<17x32xf32>
    %42 = math.exp %41 : vector<17x32xf32>
    %43 = arith.addf %40, %42 : vector<17x32xf32>
    %cst_28 = arith.constant 1.000000e+00 : f32
    %44 = vector.broadcast %cst_28 : f32 to vector<17x32xf32>
    %45 = arith.divf %44, %43 : vector<17x32xf32>
    %46 = arith.mulf %40, %45 : vector<17x32xf32>
    %c0_29 = arith.constant 0 : index
    %c0_30 = arith.constant 0 : index
    %47 = vector.load %arg18[%c0_29, %c0_30] : memref<34x32xf32, #tpu.memory_space<vmem>>, vector<17x32xf32>
    %48 = arith.mulf %46, %47 : vector<17x32xf32>
    %49 = arith.mulf %42, %45 : vector<17x32xf32>
    %c17_31 = arith.constant 17 : index
    %c0_32 = arith.constant 0 : index
    %50 = vector.load %arg18[%c17_31, %c0_32] : memref<34x32xf32, #tpu.memory_space<vmem>>, vector<17x32xf32>
    %51 = arith.mulf %49, %50 : vector<17x32xf32>
    %52 = arith.addf %48, %51 : vector<17x32xf32>
    %c0_33 = arith.constant 0 : index
    %c0_34 = arith.constant 0 : index
    %53 = vector.load %arg16[%c0_33, %c0_34] : memref<34x32xf32, #tpu.memory_space<vmem>>, vector<17x32xf32>
    tpu.vector_store %arg16[%c0_33, %c0_34], %52 {strides = array<i32>} : memref<34x32xf32, #tpu.memory_space<vmem>>, vector<17x32xf32>,
    %c17_35 = arith.constant 17 : index
    %c0_36 = arith.constant 0 : index
    %54 = vector.load %arg16[%c17_35, %c0_36] : memref<34x32xf32, #tpu.memory_space<vmem>>, vector<17x32xf32>
    %c0_37 = arith.constant 0 : index
    %c0_38 = arith.constant 0 : index
    %55 = vector.load %arg17[%c0_37, %c0_38] : memref<34x32xf32, #tpu.memory_space<vmem>>, vector<17x32xf32>
    %56 = arith.mulf %54, %55 : vector<17x32xf32>
    %57 = arith.truncf %56 : vector<17x32xf32> to vector<17x32xbf16>
    %cst_39 = arith.constant dense<0.000000e+00> : vector<17x32xf32>
    %58 = tpu.matmul %57, %28, %cst_39 {dimension_numbers = #tpu.dot_dimension_numbers<[1], [0], [0], [1], [0, 0, 1, 1], [], []>} : vector<17x32xbf16>, vector<32x32xbf16>, vector<17x32xf32> -> vector<17x32xf32>
    %c17_40 = arith.constant 17 : index
    %c0_41 = arith.constant 0 : index
    %59 = vector.load %arg17[%c17_40, %c0_41] : memref<34x32xf32, #tpu.memory_space<vmem>>, vector<17x32xf32>
    %60 = arith.mulf %54, %59 : vector<17x32xf32>
    %61 = arith.truncf %60 : vector<17x32xf32> to vector<17x32xbf16>
    %cst_42 = arith.constant dense<0.000000e+00> : vector<17x32xf32>
    %62 = tpu.matmul %61, %28, %cst_42 {dimension_numbers = #tpu.dot_dimension_numbers<[1], [0], [0], [1], [0, 0, 1, 1], [], []>} : vector<17x32xbf16>, vector<32x32xbf16>, vector<17x32xf32> -> vector<17x32xf32>
    %63 = arith.maximumf %58, %62 : vector<17x32xf32>
    %64 = arith.subf %58, %63 : vector<17x32xf32>
    %65 = math.exp %64 : vector<17x32xf32>
    %66 = arith.subf %62, %63 : vector<17x32xf32>
    %67 = math.exp %66 : vector<17x32xf32>
    %68 = arith.addf %65, %67 : vector<17x32xf32>
    %cst_43 = arith.constant 1.000000e+00 : f32
    %69 = vector.broadcast %cst_43 : f32 to vector<17x32xf32>
    %70 = arith.divf %69, %68 : vector<17x32xf32>
    %71 = arith.mulf %65, %70 : vector<17x32xf32>
    %c0_44 = arith.constant 0 : index
    %c0_45 = arith.constant 0 : index
    %72 = vector.load %arg18[%c0_44, %c0_45] : memref<34x32xf32, #tpu.memory_space<vmem>>, vector<17x32xf32>
    %73 = arith.mulf %71, %72 : vector<17x32xf32>
    %74 = arith.mulf %67, %70 : vector<17x32xf32>
    %c17_46 = arith.constant 17 : index
    %c0_47 = arith.constant 0 : index
    %75 = vector.load %arg18[%c17_46, %c0_47] : memref<34x32xf32, #tpu.memory_space<vmem>>, vector<17x32xf32>
    %76 = arith.mulf %74, %75 : vector<17x32xf32>
    %77 = arith.addf %73, %76 : vector<17x32xf32>
    %c17_48 = arith.constant 17 : index
    %c0_49 = arith.constant 0 : index
    %78 = vector.load %arg16[%c17_48, %c0_49] : memref<34x32xf32, #tpu.memory_space<vmem>>, vector<17x32xf32>
    tpu.vector_store %arg16[%c17_48, %c0_49], %77 {strides = array<i32>} : memref<34x32xf32, #tpu.memory_space<vmem>>, vector<17x32xf32>,
    %c0_50 = arith.constant 0 : index
    %c0_51 = arith.constant 0 : index
    %79 = vector.load %arg16[%c0_50, %c0_51] : memref<34x32xf32, #tpu.memory_space<vmem>>, vector<34x32xf32>
    %80 = arith.truncf %79 : vector<34x32xf32> to vector<34x32xbf16>
    %c0_52 = arith.constant 0 : index
    %c0_53 = arith.constant 0 : index
    %c0_54 = arith.constant 0 : index
    %81 = vector.load %arg9[%c0_52, %c0_53, %c0_54] : memref<1x32x32xbf16, #tpu.memory_space<vmem>>, vector<1x32x32xbf16>
    %82 = vector.shape_cast %81 : vector<1x32x32xbf16> to vector<32x32xbf16>
    %cst_55 = arith.constant dense<0.000000e+00> : vector<34x32xf32>
    %83 = tpu.matmul %80, %82, %cst_55 {dimension_numbers = #tpu.dot_dimension_numbers<[1], [0], [0], [1], [0, 0, 1, 1], [], []>} : vector<34x32xbf16>, vector<32x32xbf16>, vector<34x32xf32> -> vector<34x32xf32>
    %c0_56 = arith.constant 0 : index
    %c3 = arith.constant 3 : index
    %c0_57 = arith.constant 0 : index
    %84 = vector.load %arg13[%c0_56, %c3, %c0_57] : memref<1x9x32xf32, #tpu.memory_space<vmem>>, vector<1x1x32xf32>
    %85 = vector.shape_cast %84 : vector<1x1x32xf32> to vector<1x32xf32>
    %86 = vector.broadcast %85 : vector<1x32xf32> to vector<34x32xf32>
    %87 = arith.addf %83, %86 : vector<34x32xf32>
    %88 = arith.addf %3, %87 : vector<34x32xf32>
    %c0_58 = arith.constant 0 : index
    %c4 = arith.constant 4 : index
    %c0_59 = arith.constant 0 : index
    %89 = vector.load %arg13[%c0_58, %c4, %c0_59] : memref<1x9x32xf32, #tpu.memory_space<vmem>>, vector<1x1x32xf32>
    %90 = vector.shape_cast %89 : vector<1x1x32xf32> to vector<1x32xf32>
    %c0_60 = arith.constant 0 : index
    %c5 = arith.constant 5 : index
    %c0_61 = arith.constant 0 : index
    %91 = vector.load %arg13[%c0_60, %c5, %c0_61] : memref<1x9x32xf32, #tpu.memory_space<vmem>>, vector<1x1x32xf32>
    %92 = vector.shape_cast %91 : vector<1x1x32xf32> to vector<1x32xf32>
    %cst_62 = arith.constant dense<0.000000e+00> : vector<34xf32>
    %93 = vector.multi_reduction <add>, %88, %cst_62 [1] : vector<34x32xf32> to vector<34xf32>
    %94 = vector.shape_cast %93 : vector<34xf32> to vector<34x1xf32>
    %cst_63 = arith.constant 3.200000e+01 : f32
    %95 = vector.broadcast %cst_63 : f32 to vector<34x1xf32>
    %96 = arith.divf %94, %95 : vector<34x1xf32>
    %97 = vector.broadcast %96 : vector<34x1xf32> to vector<34x32xf32>
    %98 = arith.subf %88, %97 : vector<34x32xf32>
    %99 = arith.mulf %98, %98 : vector<34x32xf32>
    %cst_64 = arith.constant dense<0.000000e+00> : vector<34xf32>
    %100 = vector.multi_reduction <add>, %99, %cst_64 [1] : vector<34x32xf32> to vector<34xf32>
    %101 = vector.shape_cast %100 : vector<34xf32> to vector<34x1xf32>
    %cst_65 = arith.constant 3.200000e+01 : f32
    %102 = vector.broadcast %cst_65 : f32 to vector<34x1xf32>
    %103 = arith.divf %101, %102 : vector<34x1xf32>
    %cst_66 = arith.constant 9.99999974E-6 : f32
    %104 = vector.broadcast %cst_66 : f32 to vector<34x1xf32>
    %105 = arith.addf %103, %104 : vector<34x1xf32>
    %106 = math.rsqrt %105 : vector<34x1xf32>
    %107 = vector.broadcast %106 : vector<34x1xf32> to vector<34x32xf32>
    %108 = arith.mulf %98, %107 : vector<34x32xf32>
    %109 = vector.broadcast %90 : vector<1x32xf32> to vector<34x32xf32>
    %110 = arith.mulf %108, %109 : vector<34x32xf32>
    %111 = vector.broadcast %92 : vector<1x32xf32> to vector<34x32xf32>
    %112 = arith.addf %110, %111 : vector<34x32xf32>
    %113 = arith.truncf %112 : vector<34x32xf32> to vector<34x32xbf16>
    %c0_67 = arith.constant 0 : index
    %c0_68 = arith.constant 0 : index
    %c0_69 = arith.constant 0 : index
    %114 = vector.load %arg10[%c0_67, %c0_68, %c0_69] : memref<1x32x64xbf16, #tpu.memory_space<vmem>>, vector<1x32x64xbf16>
    %115 = vector.shape_cast %114 : vector<1x32x64xbf16> to vector<32x64xbf16>
    %cst_70 = arith.constant dense<0.000000e+00> : vector<34x64xf32>
    %116 = tpu.matmul %113, %115, %cst_70 {dimension_numbers = #tpu.dot_dimension_numbers<[1], [0], [0], [1], [0, 0, 1, 1], [], []>} : vector<34x32xbf16>, vector<32x64xbf16>, vector<34x64xf32> -> vector<34x64xf32>
    %c0_71 = arith.constant 0 : index
    %c0_72 = arith.constant 0 : index
    %c0_73 = arith.constant 0 : index
    %117 = vector.load %arg11[%c0_71, %c0_72, %c0_73] : memref<1x1x64xf32, #tpu.memory_space<vmem>>, vector<1x1x64xf32>
    %118 = vector.shape_cast %117 : vector<1x1x64xf32> to vector<1x64xf32>
    %119 = vector.broadcast %118 : vector<1x64xf32> to vector<34x64xf32>
    %120 = arith.addf %116, %119 : vector<34x64xf32>
    %cst_74 = arith.constant 5.000000e-01 : f32
    %121 = vector.broadcast %cst_74 : f32 to vector<34x64xf32>
    %122 = arith.mulf %121, %120 : vector<34x64xf32>
    %cst_75 = arith.constant 0.707106769 : f32
    %123 = vector.broadcast %cst_75 : f32 to vector<34x64xf32>
    %124 = arith.mulf %120, %123 : vector<34x64xf32>
    %125 = math.absf %124 : vector<34x64xf32>
    %cst_76 = arith.constant 0.327591091 : f32
    %126 = vector.broadcast %cst_76 : f32 to vector<34x64xf32>
    %127 = arith.mulf %126, %125 : vector<34x64xf32>
    %cst_77 = arith.constant 1.000000e+00 : f32
    %128 = vector.broadcast %cst_77 : f32 to vector<34x64xf32>
    %129 = arith.addf %128, %127 : vector<34x64xf32>
    %cst_78 = arith.constant 1.000000e+00 : f32
    %130 = vector.broadcast %cst_78 : f32 to vector<34x64xf32>
    %131 = arith.divf %130, %129 : vector<34x64xf32>
    %cst_79 = arith.constant 1.06140542 : f32
    %132 = vector.broadcast %cst_79 : f32 to vector<34x64xf32>
    %133 = arith.mulf %132, %131 : vector<34x64xf32>
    %cst_80 = arith.constant -1.45315206 : f32
    %134 = vector.broadcast %cst_80 : f32 to vector<34x64xf32>
    %135 = arith.addf %133, %134 : vector<34x64xf32>
    %136 = arith.mulf %135, %131 : vector<34x64xf32>
    %cst_81 = arith.constant 1.42141378 : f32
    %137 = vector.broadcast %cst_81 : f32 to vector<34x64xf32>
    %138 = arith.addf %136, %137 : vector<34x64xf32>
    %139 = arith.mulf %138, %131 : vector<34x64xf32>
    %cst_82 = arith.constant -0.284496725 : f32
    %140 = vector.broadcast %cst_82 : f32 to vector<34x64xf32>
    %141 = arith.addf %139, %140 : vector<34x64xf32>
    %142 = arith.mulf %141, %131 : vector<34x64xf32>
    %cst_83 = arith.constant 0.254829586 : f32
    %143 = vector.broadcast %cst_83 : f32 to vector<34x64xf32>
    %144 = arith.addf %142, %143 : vector<34x64xf32>
    %145 = arith.mulf %144, %131 : vector<34x64xf32>
    %cst_84 = arith.constant 0.000000e+00 : f32
    %146 = vector.broadcast %cst_84 : f32 to vector<34x64xf32>
    %147 = arith.subf %146, %125 : vector<34x64xf32>
    %148 = arith.mulf %147, %125 : vector<34x64xf32>
    %149 = math.exp %148 : vector<34x64xf32>
    %150 = arith.mulf %145, %149 : vector<34x64xf32>
    %cst_85 = arith.constant 1.000000e+00 : f32
    %151 = vector.broadcast %cst_85 : f32 to vector<34x64xf32>
    %152 = arith.subf %151, %150 : vector<34x64xf32>
    %cst_86 = arith.constant 0.000000e+00 : f32
    %153 = vector.broadcast %cst_86 : f32 to vector<34x64xf32>
    %154 = arith.cmpf oge, %124, %153 : vector<34x64xf32>
    %cst_87 = arith.constant 0.000000e+00 : f32
    %155 = vector.broadcast %cst_87 : f32 to vector<34x64xf32>
    %156 = arith.subf %155, %152 : vector<34x64xf32>
    %157 = arith.select %154, %152, %156 : vector<34x64xi1>, vector<34x64xf32>
    %cst_88 = arith.constant 1.000000e+00 : f32
    %158 = vector.broadcast %cst_88 : f32 to vector<34x64xf32>
    %159 = arith.addf %158, %157 : vector<34x64xf32>
    %160 = arith.mulf %122, %159 : vector<34x64xf32>
    %161 = arith.truncf %160 : vector<34x64xf32> to vector<34x64xbf16>
    %c0_89 = arith.constant 0 : index
    %c0_90 = arith.constant 0 : index
    %c0_91 = arith.constant 0 : index
    %162 = vector.load %arg12[%c0_89, %c0_90, %c0_91] : memref<1x64x32xbf16, #tpu.memory_space<vmem>>, vector<1x64x32xbf16>
    %163 = vector.shape_cast %162 : vector<1x64x32xbf16> to vector<64x32xbf16>
    %cst_92 = arith.constant dense<0.000000e+00> : vector<34x32xf32>
    %164 = tpu.matmul %161, %163, %cst_92 {dimension_numbers = #tpu.dot_dimension_numbers<[1], [0], [0], [1], [0, 0, 1, 1], [], []>} : vector<34x64xbf16>, vector<64x32xbf16>, vector<34x32xf32> -> vector<34x32xf32>
    %c0_93 = arith.constant 0 : index
    %c6 = arith.constant 6 : index
    %c0_94 = arith.constant 0 : index
    %165 = vector.load %arg13[%c0_93, %c6, %c0_94] : memref<1x9x32xf32, #tpu.memory_space<vmem>>, vector<1x1x32xf32>
    %166 = vector.shape_cast %165 : vector<1x1x32xf32> to vector<1x32xf32>
    %167 = vector.broadcast %166 : vector<1x32xf32> to vector<34x32xf32>
    %168 = arith.addf %164, %167 : vector<34x32xf32>
    %169 = arith.addf %112, %168 : vector<34x32xf32>
    %c0_95 = arith.constant 0 : index
    %c7 = arith.constant 7 : index
    %c0_96 = arith.constant 0 : index
    %170 = vector.load %arg13[%c0_95, %c7, %c0_96] : memref<1x9x32xf32, #tpu.memory_space<vmem>>, vector<1x1x32xf32>
    %171 = vector.shape_cast %170 : vector<1x1x32xf32> to vector<1x32xf32>
    %c0_97 = arith.constant 0 : index
    %c8 = arith.constant 8 : index
    %c0_98 = arith.constant 0 : index
    %172 = vector.load %arg13[%c0_97, %c8, %c0_98] : memref<1x9x32xf32, #tpu.memory_space<vmem>>, vector<1x1x32xf32>
    %173 = vector.shape_cast %172 : vector<1x1x32xf32> to vector<1x32xf32>
    %cst_99 = arith.constant dense<0.000000e+00> : vector<34xf32>
    %174 = vector.multi_reduction <add>, %169, %cst_99 [1] : vector<34x32xf32> to vector<34xf32>
    %175 = vector.shape_cast %174 : vector<34xf32> to vector<34x1xf32>
    %cst_100 = arith.constant 3.200000e+01 : f32
    %176 = vector.broadcast %cst_100 : f32 to vector<34x1xf32>
    %177 = arith.divf %175, %176 : vector<34x1xf32>
    %178 = vector.broadcast %177 : vector<34x1xf32> to vector<34x32xf32>
    %179 = arith.subf %169, %178 : vector<34x32xf32>
    %180 = arith.mulf %179, %179 : vector<34x32xf32>
    %cst_101 = arith.constant dense<0.000000e+00> : vector<34xf32>
    %181 = vector.multi_reduction <add>, %180, %cst_101 [1] : vector<34x32xf32> to vector<34xf32>
    %182 = vector.shape_cast %181 : vector<34xf32> to vector<34x1xf32>
    %cst_102 = arith.constant 3.200000e+01 : f32
    %183 = vector.broadcast %cst_102 : f32 to vector<34x1xf32>
    %184 = arith.divf %182, %183 : vector<34x1xf32>
    %cst_103 = arith.constant 9.99999974E-6 : f32
    %185 = vector.broadcast %cst_103 : f32 to vector<34x1xf32>
    %186 = arith.addf %184, %185 : vector<34x1xf32>
    %187 = math.rsqrt %186 : vector<34x1xf32>
    %188 = vector.broadcast %187 : vector<34x1xf32> to vector<34x32xf32>
    %189 = arith.mulf %179, %188 : vector<34x32xf32>
    %190 = vector.broadcast %171 : vector<1x32xf32> to vector<34x32xf32>
    %191 = arith.mulf %189, %190 : vector<34x32xf32>
    %192 = vector.broadcast %173 : vector<1x32xf32> to vector<34x32xf32>
    %193 = arith.addf %191, %192 : vector<34x32xf32>
    %c0_104 = arith.constant 0 : index
    %c0_105 = arith.constant 0 : index
    %194 = vector.load %arg15[%c0_104, %c0_105] : memref<34x32xf32, #tpu.memory_space<vmem>>, vector<34x32xf32>
    tpu.vector_store %arg15[%c0_104, %c0_105], %193 {strides = array<i32>} : memref<34x32xf32, #tpu.memory_space<vmem>>, vector<34x32xf32>,
    %c1_i32 = arith.constant 1 : i32
    %195 = arith.cmpi eq, %arg0, %c1_i32 : i32
    %196 = arith.extui %195 : i1 to i32
    %c0_i32_106 = arith.constant 0 : i32
    %197 = arith.cmpi ne, %196, %c0_i32_106 : i32
    scf.if %197 {
      %198 = tpu.iota {dimensions = array<i32: 1>} : vector<2x34xi32>
      %199 = tpu.iota {dimensions = array<i32: 0>} : vector<2x34xi32>
      %c17_i32 = arith.constant 17 : i32
      %200 = vector.broadcast %c17_i32 : i32 to vector<2x34xi32>
      %201 = arith.muli %200, %199 : vector<2x34xi32>
      %202 = arith.cmpi eq, %198, %201 : vector<2x34xi32>
      %203 = arith.extui %202 : vector<2x34xi1> to vector<2x34xi32>
      %204 = arith.sitofp %203 : vector<2x34xi32> to vector<2x34xf32>
      %cst_107 = arith.constant dense<0.000000e+00> : vector<2x32xf32>
      %205 = tpu.matmul %204, %193, %cst_107 {dimension_numbers = #tpu.dot_dimension_numbers<[1], [0], [0], [1], [0, 0, 1, 1], [], []>} : vector<2x34xf32>, vector<34x32xf32>, vector<2x32xf32> -> vector<2x32xf32>
      %c0_108 = arith.constant 0 : index
      %c0_109 = arith.constant 0 : index
      %206 = vector.load %arg5[%c0_108, %c0_109] : memref<2x32xf32, #tpu.memory_space<vmem>>, vector<1x32xf32>
      %c1_110 = arith.constant 1 : index
      %c0_111 = arith.constant 0 : index
      %207 = vector.load %arg5[%c1_110, %c0_111] : memref<2x32xf32, #tpu.memory_space<vmem>>, vector<1x32xf32>
      %cst_112 = arith.constant dense<0.000000e+00> : vector<2xf32>
      %208 = vector.multi_reduction <add>, %205, %cst_112 [1] : vector<2x32xf32> to vector<2xf32>
      %209 = vector.shape_cast %208 : vector<2xf32> to vector<2x1xf32>
      %cst_113 = arith.constant 3.200000e+01 : f32
      %210 = vector.broadcast %cst_113 : f32 to vector<2x1xf32>
      %211 = arith.divf %209, %210 : vector<2x1xf32>
      %212 = vector.broadcast %211 : vector<2x1xf32> to vector<2x32xf32>
      %213 = arith.subf %205, %212 : vector<2x32xf32>
      %214 = arith.mulf %213, %213 : vector<2x32xf32>
      %cst_114 = arith.constant dense<0.000000e+00> : vector<2xf32>
      %215 = vector.multi_reduction <add>, %214, %cst_114 [1] : vector<2x32xf32> to vector<2xf32>
      %216 = vector.shape_cast %215 : vector<2xf32> to vector<2x1xf32>
      %cst_115 = arith.constant 3.200000e+01 : f32
      %217 = vector.broadcast %cst_115 : f32 to vector<2x1xf32>
      %218 = arith.divf %216, %217 : vector<2x1xf32>
      %cst_116 = arith.constant 9.99999974E-6 : f32
      %219 = vector.broadcast %cst_116 : f32 to vector<2x1xf32>
      %220 = arith.addf %218, %219 : vector<2x1xf32>
      %221 = math.rsqrt %220 : vector<2x1xf32>
      %222 = vector.broadcast %221 : vector<2x1xf32> to vector<2x32xf32>
      %223 = arith.mulf %213, %222 : vector<2x32xf32>
      %224 = vector.broadcast %206 : vector<1x32xf32> to vector<2x32xf32>
      %225 = arith.mulf %223, %224 : vector<2x32xf32>
      %226 = vector.broadcast %207 : vector<1x32xf32> to vector<2x32xf32>
      %227 = arith.addf %225, %226 : vector<2x32xf32>
      %228 = arith.truncf %227 : vector<2x32xf32> to vector<2x32xbf16>
      %c0_117 = arith.constant 0 : index
      %c0_118 = arith.constant 0 : index
      %229 = vector.load %arg6[%c0_117, %c0_118] : memref<32x8xbf16, #tpu.memory_space<vmem>>, vector<32x8xbf16>
      %cst_119 = arith.constant dense<0.000000e+00> : vector<2x8xf32>
      %230 = tpu.matmul %228, %229, %cst_119 {dimension_numbers = #tpu.dot_dimension_numbers<[1], [0], [0], [1], [0, 0, 1, 1], [], []>} : vector<2x32xbf16>, vector<32x8xbf16>, vector<2x8xf32> -> vector<2x8xf32>
      %c0_120 = arith.constant 0 : index
      %c0_121 = arith.constant 0 : index
      %231 = vector.load %arg7[%c0_120, %c0_121] : memref<1x8xf32, #tpu.memory_space<vmem>>, vector<1x8xf32>
      %232 = vector.broadcast %231 : vector<1x8xf32> to vector<2x8xf32>
      %233 = arith.addf %230, %232 : vector<2x8xf32>
      %c0_122 = arith.constant 0 : index
      %c0_123 = arith.constant 0 : index
      %234 = vector.load %arg14[%c0_122, %c0_123] : memref<2x8xf32, #tpu.memory_space<vmem>>, vector<2x8xf32>
      tpu.vector_store %arg14[%c0_122, %c0_123], %233 {strides = array<i32>} : memref<2x8xf32, #tpu.memory_space<vmem>>, vector<2x8xf32>,
    } else {
    }
    return
  }
  func.func @transform_0(%arg0: i32) -> (i32, i32) {
    %c0_i32 = arith.constant 0 : i32
    %c0_i32_0 = arith.constant 0 : i32
    %c0_i32_1 = arith.constant 0 : i32
    return %c0_i32, %c0_i32_0 : i32, i32
  }
  func.func @transform_1(%arg0: i32) -> (i32, i32) {
    %c0_i32 = arith.constant 0 : i32
    %c0_i32_0 = arith.constant 0 : i32
    %c0_i32_1 = arith.constant 0 : i32
    return %c0_i32, %c0_i32_0 : i32, i32
  }
  func.func @transform_2(%arg0: i32) -> (i32, i32) {
    %c0_i32 = arith.constant 0 : i32
    %c0_i32_0 = arith.constant 0 : i32
    %c0_i32_1 = arith.constant 0 : i32
    return %c0_i32, %c0_i32_0 : i32, i32
  }
  func.func @transform_3(%arg0: i32) -> (i32, i32) {
    %c0_i32 = arith.constant 0 : i32
    %c0_i32_0 = arith.constant 0 : i32
    %c0_i32_1 = arith.constant 0 : i32
    return %c0_i32, %c0_i32_0 : i32, i32
  }
  func.func @transform_4(%arg0: i32) -> (i32, i32) {
    %c0_i32 = arith.constant 0 : i32
    %c0_i32_0 = arith.constant 0 : i32
    %c0_i32_1 = arith.constant 0 : i32
    return %c0_i32, %c0_i32_0 : i32, i32
  }
  func.func @transform_5(%arg0: i32) -> (i32, i32) {
    %c0_i32 = arith.constant 0 : i32
    %c0_i32_0 = arith.constant 0 : i32
    %c0_i32_1 = arith.constant 0 : i32
    return %c0_i32, %c0_i32_0 : i32, i32
  }
  func.func @transform_6(%arg0: i32) -> (i32, i32) {
    %c0_i32 = arith.constant 0 : i32
    %c0_i32_0 = arith.constant 0 : i32
    %c0_i32_1 = arith.constant 0 : i32
    return %c0_i32, %c0_i32_0 : i32, i32
  }
  func.func @transform_7(%arg0: i32) -> (i32, i32, i32) {
    %c0_i32 = arith.constant 0 : i32
    %c0_i32_0 = arith.constant 0 : i32
    %c0_i32_1 = arith.constant 0 : i32
    return %arg0, %c0_i32, %c0_i32_0 : i32, i32, i32
  }
  func.func @transform_8(%arg0: i32) -> (i32, i32, i32) {
    %c0_i32 = arith.constant 0 : i32
    %c0_i32_0 = arith.constant 0 : i32
    %c0_i32_1 = arith.constant 0 : i32
    return %arg0, %c0_i32, %c0_i32_0 : i32, i32, i32
  }
  func.func @transform_9(%arg0: i32) -> (i32, i32, i32) {
    %c0_i32 = arith.constant 0 : i32
    %c0_i32_0 = arith.constant 0 : i32
    %c0_i32_1 = arith.constant 0 : i32
    return %arg0, %c0_i32, %c0_i32_0 : i32, i32, i32
  }
  func.func @transform_10(%arg0: i32) -> (i32, i32, i32) {
    %c0_i32 = arith.constant 0 : i32
    %c0_i32_0 = arith.constant 0 : i32
    %c0_i32_1 = arith.constant 0 : i32
    return %arg0, %c0_i32, %c0_i32_0 : i32, i32, i32
  }
  func.func @transform_11(%arg0: i32) -> (i32, i32, i32) {
    %c0_i32 = arith.constant 0 : i32
    %c0_i32_0 = arith.constant 0 : i32
    %c0_i32_1 = arith.constant 0 : i32
    return %arg0, %c0_i32, %c0_i32_0 : i32, i32, i32
  }
  func.func @transform_12(%arg0: i32) -> (i32, i32, i32) {
    %c0_i32 = arith.constant 0 : i32
    %c0_i32_0 = arith.constant 0 : i32
    %c0_i32_1 = arith.constant 0 : i32
    return %arg0, %c0_i32, %c0_i32_0 : i32, i32, i32
  }
  func.func @transform_13(%arg0: i32) -> (i32, i32) {
    %c0_i32 = arith.constant 0 : i32
    %c0_i32_0 = arith.constant 0 : i32
    %c0_i32_1 = arith.constant 0 : i32
    return %c0_i32, %c0_i32_0 : i32, i32
  }
}

</mosaic_0001>

<llo_original>
// kernel: tile.9
$region0: #{tile.9}
  %s0 = inlined_call_operand.vmem [shape: f32[2,17,32], index: 0, kind: input, shape index: {}]
  %s1 = inlined_call_operand.vmem [shape: f32[34,32], index: 1, kind: output, shape index: {}]
  %v2 = vld [vmem:[%s0] sm:$0xff]
  %vm3 = vcmask 261120
  %4 = vst.msk [vmem:[%s1] sm:$0xff] %vm3, %v2
  %s5 = scalar_lea.vmem %s0, 8
  %v6 = vld [vmem:[%s5] sm:$0xff]
  %vm7 = vcmask 261120
  %s8 = scalar_lea.vmem %s1, 8
  %9 = vst.msk [vmem:[%s8] sm:$0xff] %vm7, %v6
  %s10 = scalar_lea.vmem %s0, 16
  %s11 = smov 3
  %v12 = vld [vmem:[%s10] ss:$8 sm:%s11]
  %vm13 = vcmask 261120
  %s14 = scalar_lea.vmem %s1, 16
  %15 = vst.msk [vmem:[%s14] sm:$0x3] %vm13, %v12
  %s16 = scalar_lea.vmem %s0, 25
  %v17 = vld [vmem:[%s16] sm:$0xff]
  %vm18 = vcmask 261120
  %s19 = scalar_lea.vmem %s1, 18
  %20 = vst.msk [vmem:[%s19] sm:$0xff] %vm18, %v17
  %s21 = scalar_lea.vmem %s0, 33
  %v22 = vld [vmem:[%s21] sm:$0xff]
  %vm23 = vcmask 261120
  %s24 = scalar_lea.vmem %s1, 26
  %25 = vst.msk [vmem:[%s24] sm:$0xff] %vm23, %v22

// kernel: _lambda_.1
$region0: #{_lambda_.1}
  #allocation0 [shape = 'u32[]', space=smem, size = 0x4, offset = 0x4, fixed_abs, tag = 'smem constant byte address 0x4 - core index']
  #allocation1 [shape = 'u32[72,128]{1,0:T(1,128)}', space=vmem, size = 0x9000, scoped, tag = 'internal scratch']
  #allocation2 [shape = 'f32[34,32]{1,0:T(8,128)}', space=vmem, size = 0x5000, scoped, tag = 'scratch operand']
  #allocation3 [shape = 'f32[34,32]{1,0:T(8,128)}', space=vmem, size = 0x5000, scoped, tag = 'scratch operand']
  #allocation4 [shape = 'f32[34,32]{1,0:T(8,128)}', space=vmem, size = 0x5000, scoped, tag = 'scratch operand']
  #allocation5 [shape = 'f32[34,32]{1,0:T(8,128)}', space=vmem, size = 0x5000, scoped, tag = 'scratch operand']
  %s0 = inlined_call_operand.vmem [shape: bf16[34,48], index: 0, kind: input, shape index: {}]
  %s1 = inlined_call_operand.vmem [shape: bf16[48,32], index: 1, kind: input, shape index: {}]
  %s2 = inlined_call_operand.vmem [shape: f32[34,32], index: 2, kind: input, shape index: {}]
  %s3 = inlined_call_operand.vmem [shape: bf16[32,32], index: 3, kind: input, shape index: {}]
  %s4 = inlined_call_operand.vmem [shape: f32[2,32], index: 4, kind: input, shape index: {}]
  %s5 = inlined_call_operand.vmem [shape: bf16[32,8], index: 5, kind: input, shape index: {}]
  %s6 = inlined_call_operand.vmem [shape: f32[1,8], index: 6, kind: input, shape index: {}]
  %s7 = inlined_call_operand.vmem [shape: bf16[2,32,96], index: 7, kind: input, shape index: {}]
  %s8 = inlined_call_operand.vmem [shape: bf16[2,32,32], index: 8, kind: input, shape index: {}]
  %s9 = inlined_call_operand.vmem [shape: bf16[2,32,64], index: 9, kind: input, shape index: {}]
  %s10 = inlined_call_operand.vmem [shape: f32[2,1,64], index: 10, kind: input, shape index: {}]
  %s11 = inlined_call_operand.vmem [shape: bf16[2,64,32], index: 11, kind: input, shape index: {}]
  %s12 = inlined_call_operand.vmem [shape: f32[2,9,32], index: 12, kind: input, shape index: {}]
  %s13 = inlined_call_operand.hbm [shape: f32[2,8], index: 13, kind: output, shape index: {}]
  %s14 = sld [smem:[#allocation0]]
  $region93: #{_lambda_.1} parent=0
    _
  %s16 = ssub.s32 1, %s14
  %s17 = scalar_select 0, %s16, %s14
  $region1: #{_lambda_.1} parent=0
    #allocation6 [shape = 'u8[1024]{0}', space=vmem, size = 0x400, scoped, tag = 'output window, operand 0, single buffered']
    #allocation7 [shape = 's32[2]{0}', space=sflag, size = 0x8, scoped, tag = 'scoped memory for _lambda_.1']
    %18 = vsyncpa [#allocation7], 0
    loop: start=0, step=1, limit=4
    $region2: #{_lambda_.1} parent=1 // loop_pre_header
      _
    $region3: #{_lambda_.1} parent=1 // loop_header
      %s20 = sphi 0, %s24
      %p21 = scmp.ge.s32.totalorder %s20, 4
      %s28 = sphi 0, %s28
      %s30 = sphi 0, %s28
      %s31 = sphi 0, %s30
      %s45 = sphi 0, %s31
      %s49 = sphi 0, %s49
      %s51 = sphi 0, %s49
      %s52 = sphi 0, %s51
      %s66 = sphi 0, %s52
      %s70 = sphi 0, %s70
      %s72 = sphi 0, %s70
      %s73 = sphi 0, %s72
      %s87 = sphi 0, %s73
      %s91 = sphi 0, %s91
      %s93 = sphi 0, %s91
      %s94 = sphi 0, %s93
      %s108 = sphi 0, %s94
      %s112 = sphi 0, %s112
      %s114 = sphi 0, %s112
      %s115 = sphi 0, %s114
      %s129 = sphi 0, %s115
      %s133 = sphi 0, %s133
      %s135 = sphi 0, %s133
      %s136 = sphi 0, %s135
      %s150 = sphi 0, %s136
      %s154 = sphi 0, %s154
      %s156 = sphi 0, %s154
      %s157 = sphi 0, %s156
      %s171 = sphi 0, %s157
      %s177 = sphi 0, %s179
      %s180 = sphi 0, %s177
      %s181 = sphi 0, %s180
      %s197 = sphi 0, %s181
      %s203 = sphi 0, %s205
      %s206 = sphi 0, %s203
      %s207 = sphi 0, %s206
      %s223 = sphi 0, %s207
      %s229 = sphi 0, %s231
      %s232 = sphi 0, %s229
      %s233 = sphi 0, %s232
      %s249 = sphi 0, %s233
      %s255 = sphi 0, %s257
      %s258 = sphi 0, %s255
      %s259 = sphi 0, %s258
      %s275 = sphi 0, %s259
      %s281 = sphi 0, %s283
      %s284 = sphi 0, %s281
      %s285 = sphi 0, %s284
      %s301 = sphi 0, %s285
      %s307 = sphi 0, %s309
      %s310 = sphi 0, %s307
      %s311 = sphi 0, %s310
      %s327 = sphi 0, %s311
      %s331 = sphi 0, %s331
      %s333 = sphi 0, %s331
      %s334 = sphi 0, %s333
      %s348 = sphi 0, %s334
    $region4: #{_lambda_.1} parent=1 // loop_header_branch
      %23 = sbr.rel (%p21) target = $region8
    $region5: #{_lambda_.1} parent=1 // loop_body
      %s25 = ssub.s32 %s20, 1
      %s26 = ssub.s32 %s20, 2
      %s27 = sadd.s32 %s20, 1
      %s29 = sadd.s32 %s28, 1
      %p32 = scmp.eq.s32.totalorder %s20, 1
      %p33 = scmp.ne.s32.totalorder %s28, %s30
      %p34 = scmp.eq.s32.totalorder %s20, 0
      %p35 = por %p33, %p34
      %p36 = scmp.ne.s32.totalorder %s28, %s30
      %p37 = scmp.eq.s32.totalorder %s25, 1
      %p38 = por %p36, %p37
      %p39 = scmp.ne.s32.totalorder %s30, %s31
      %p40 = scmp.eq.s32.totalorder %s25, 0
      %p41 = por %p39, %p40
      %p42 = scmp.ne.s32.totalorder %s30, %s31
      %p43 = scmp.eq.s32.totalorder %s26, 1
      %p44 = por %p42, %p43
      %p46 = scmp.ne.s32.totalorder %s31, %s45
      %p47 = scmp.eq.s32.totalorder %s26, 0
      %p48 = por %p46, %p47
      %s50 = sadd.s32 %s49, 1
      %p53 = scmp.eq.s32.totalorder %s20, 1
      %p54 = scmp.ne.s32.totalorder %s49, %s51
      %p55 = scmp.eq.s32.totalorder %s20, 0
      %p56 = por %p54, %p55
      %p57 = scmp.ne.s32.totalorder %s49, %s51
      %p58 = scmp.eq.s32.totalorder %s25, 1
      %p59 = por %p57, %p58
      %p60 = scmp.ne.s32.totalorder %s51, %s52
      %p61 = scmp.eq.s32.totalorder %s25, 0
      %p62 = por %p60, %p61
      %p63 = scmp.ne.s32.totalorder %s51, %s52
      %p64 = scmp.eq.s32.totalorder %s26, 1
      %p65 = por %p63, %p64
      %p67 = scmp.ne.s32.totalorder %s52, %s66
      %p68 = scmp.eq.s32.totalorder %s26, 0
      %p69 = por %p67, %p68
      %s71 = sadd.s32 %s70, 1
      %p74 = scmp.eq.s32.totalorder %s20, 1
      %p75 = scmp.ne.s32.totalorder %s70, %s72
      %p76 = scmp.eq.s32.totalorder %s20, 0
      %p77 = por %p75, %p76
      %p78 = scmp.ne.s32.totalorder %s70, %s72
      %p79 = scmp.eq.s32.totalorder %s25, 1
      %p80 = por %p78, %p79
      %p81 = scmp.ne.s32.totalorder %s72, %s73
      %p82 = scmp.eq.s32.totalorder %s25, 0
      %p83 = por %p81, %p82
      %p84 = scmp.ne.s32.totalorder %s72, %s73
      %p85 = scmp.eq.s32.totalorder %s26, 1
      %p86 = por %p84, %p85
      %p88 = scmp.ne.s32.totalorder %s73, %s87
      %p89 = scmp.eq.s32.totalorder %s26, 0
      %p90 = por %p88, %p89
      %s92 = sadd.s32 %s91, 1
      %p95 = scmp.eq.s32.totalorder %s20, 1
      %p96 = scmp.ne.s32.totalorder %s91, %s93
      %p97 = scmp.eq.s32.totalorder %s20, 0
      %p98 = por %p96, %p97
      %p99 = scmp.ne.s32.totalorder %s91, %s93
      %p100 = scmp.eq.s32.totalorder %s25, 1
      %p101 = por %p99, %p100
      %p102 = scmp.ne.s32.totalorder %s93, %s94
      %p103 = scmp.eq.s32.totalorder %s25, 0
      %p104 = por %p102, %p103
      %p105 = scmp.ne.s32.totalorder %s93, %s94
      %p106 = scmp.eq.s32.totalorder %s26, 1
      %p107 = por %p105, %p106
      %p109 = scmp.ne.s32.totalorder %s94, %s108
      %p110 = scmp.eq.s32.totalorder %s26, 0
      %p111 = por %p109, %p110
      %s113 = sadd.s32 %s112, 1
      %p116 = scmp.eq.s32.totalorder %s20, 1
      %p117 = scmp.ne.s32.totalorder %s112, %s114
      %p118 = scmp.eq.s32.totalorder %s20, 0
      %p119 = por %p117, %p118
      %p120 = scmp.ne.s32.totalorder %s112, %s114
      %p121 = scmp.eq.s32.totalorder %s25, 1
      %p122 = por %p120, %p121
      %p123 = scmp.ne.s32.totalorder %s114, %s115
      %p124 = scmp.eq.s32.totalorder %s25, 0
      %p125 = por %p123, %p124
      %p126 = scmp.ne.s32.totalorder %s114, %s115
      %p127 = scmp.eq.s32.totalorder %s26, 1
      %p128 = por %p126, %p127
      %p130 = scmp.ne.s32.totalorder %s115, %s129
      %p131 = scmp.eq.s32.totalorder %s26, 0
      %p132 = por %p130, %p131
      %s134 = sadd.s32 %s133, 1
      %p137 = scmp.eq.s32.totalorder %s20, 1
      %p138 = scmp.ne.s32.totalorder %s133, %s135
      %p139 = scmp.eq.s32.totalorder %s20, 0
      %p140 = por %p138, %p139
      %p141 = scmp.ne.s32.totalorder %s133, %s135
      %p142 = scmp.eq.s32.totalorder %s25, 1
      %p143 = por %p141, %p142
      %p144 = scmp.ne.s32.totalorder %s135, %s136
      %p145 = scmp.eq.s32.totalorder %s25, 0
      %p146 = por %p144, %p145
      %p147 = scmp.ne.s32.totalorder %s135, %s136
      %p148 = scmp.eq.s32.totalorder %s26, 1
      %p149 = por %p147, %p148
      %p151 = scmp.ne.s32.totalorder %s136, %s150
      %p152 = scmp.eq.s32.totalorder %s26, 0
      %p153 = por %p151, %p152
      %s155 = sadd.s32 %s154, 1
      %p158 = scmp.eq.s32.totalorder %s20, 1
      %p159 = scmp.ne.s32.totalorder %s154, %s156
      %p160 = scmp.eq.s32.totalorder %s20, 0
      %p161 = por %p159, %p160
      %p162 = scmp.ne.s32.totalorder %s154, %s156
      %p163 = scmp.eq.s32.totalorder %s25, 1
      %p164 = por %p162, %p163
      %p165 = scmp.ne.s32.totalorder %s156, %s157
      %p166 = scmp.eq.s32.totalorder %s25, 0
      %p167 = por %p165, %p166
      %p168 = scmp.ne.s32.totalorder %s156, %s157
      %p169 = scmp.eq.s32.totalorder %s26, 1
      %p170 = por %p168, %p169
      %p172 = scmp.ne.s32.totalorder %s157, %s171
      %p173 = scmp.eq.s32.totalorder %s26, 0
      %p174 = por %p172, %p173
      %s175 = ssub.s32 %s20, %s27
      %p176 = scmp.eq.s32.totalorder %s175, 0
      %s178 = sadd.s32 %s177, 1
      %s179 = scalar_select %p176, %s177, %s178
      %p182 = pneg %p176
      %p183 = scmp.eq.s32.totalorder %s20, 1
      %p184 = por %p182, %p183
      %p185 = scmp.ne.s32.totalorder %s177, %s180
      %p186 = scmp.eq.s32.totalorder %s20, 0
      %p187 = por %p185, %p186
      %p188 = scmp.ne.s32.totalorder %s177, %s180
      %p189 = scmp.eq.s32.totalorder %s25, 1
      %p190 = por %p188, %p189
      %p191 = scmp.ne.s32.totalorder %s180, %s181
      %p192 = scmp.eq.s32.totalorder %s25, 0
      %p193 = por %p191, %p192
      %p194 = scmp.ne.s32.totalorder %s180, %s181
      %p195 = scmp.eq.s32.totalorder %s26, 1
      %p196 = por %p194, %p195
      %p198 = scmp.ne.s32.totalorder %s181, %s197
      %p199 = scmp.eq.s32.totalorder %s26, 0
      %p200 = por %p198, %p199
      %s201 = ssub.s32 %s20, %s27
      %p202 = scmp.eq.s32.totalorder %s201, 0
      %s204 = sadd.s32 %s203, 1
      %s205 = scalar_select %p202, %s203, %s204
      %p208 = pneg %p202
      %p209 = scmp.eq.s32.totalorder %s20, 1
      %p210 = por %p208, %p209
      %p211 = scmp.ne.s32.totalorder %s203, %s206
      %p212 = scmp.eq.s32.totalorder %s20, 0
      %p213 = por %p211, %p212
      %p214 = scmp.ne.s32.totalorder %s203, %s206
      %p215 = scmp.eq.s32.totalorder %s25, 1
      %p216 = por %p214, %p215
      %p217 = scmp.ne.s32.totalorder %s206, %s207
      %p218 = scmp.eq.s32.totalorder %s25, 0
      %p219 = por %p217, %p218
      %p220 = scmp.ne.s32.totalorder %s206, %s207
      %p221 = scmp.eq.s32.totalorder %s26, 1
      %p222 = por %p220, %p221
      %p224 = scmp.ne.s32.totalorder %s207, %s223
      %p225 = scmp.eq.s32.totalorder %s26, 0
      %p226 = por %p224, %p225
      %s227 = ssub.s32 %s20, %s27
      %p228 = scmp.eq.s32.totalorder %s227, 0
      %s230 = sadd.s32 %s229, 1
      %s231 = scalar_select %p228, %s229, %s230
      %p234 = pneg %p228
      %p235 = scmp.eq.s32.totalorder %s20, 1
      %p236 = por %p234, %p235
      %p237 = scmp.ne.s32.totalorder %s229, %s232
      %p238 = scmp.eq.s32.totalorder %s20, 0
      %p239 = por %p237, %p238
      %p240 = scmp.ne.s32.totalorder %s229, %s232
      %p241 = scmp.eq.s32.totalorder %s25, 1
      %p242 = por %p240, %p241
      %p243 = scmp.ne.s32.totalorder %s232, %s233
      %p244 = scmp.eq.s32.totalorder %s25, 0
      %p245 = por %p243, %p244
      %p246 = scmp.ne.s32.totalorder %s232, %s233
      %p247 = scmp.eq.s32.totalorder %s26, 1
      %p248 = por %p246, %p247
      %p250 = scmp.ne.s32.totalorder %s233, %s249
      %p251 = scmp.eq.s32.totalorder %s26, 0
      %p252 = por %p250, %p251
      %s253 = ssub.s32 %s20, %s27
      %p254 = scmp.eq.s32.totalorder %s253, 0
      %s256 = sadd.s32 %s255, 1
      %s257 = scalar_select %p254, %s255, %s256
      %p260 = pneg %p254
      %p261 = scmp.eq.s32.totalorder %s20, 1
      %p262 = por %p260, %p261
      %p263 = scmp.ne.s32.totalorder %s255, %s258
      %p264 = scmp.eq.s32.totalorder %s20, 0
      %p265 = por %p263, %p264
      %p266 = scmp.ne.s32.totalorder %s255, %s258
      %p267 = scmp.eq.s32.totalorder %s25, 1
      %p268 = por %p266, %p267
      %p269 = scmp.ne.s32.totalorder %s258, %s259
      %p270 = scmp.eq.s32.totalorder %s25, 0
      %p271 = por %p269, %p270
      %p272 = scmp.ne.s32.totalorder %s258, %s259
      %p273 = scmp.eq.s32.totalorder %s26, 1
      %p274 = por %p272, %p273
      %p276 = scmp.ne.s32.totalorder %s259, %s275
      %p277 = scmp.eq.s32.totalorder %s26, 0
      %p278 = por %p276, %p277
      %s279 = ssub.s32 %s20, %s27
      %p280 = scmp.eq.s32.totalorder %s279, 0
      %s282 = sadd.s32 %s281, 1
      %s283 = scalar_select %p280, %s281, %s282
      %p286 = pneg %p280
      %p287 = scmp.eq.s32.totalorder %s20, 1
      %p288 = por %p286, %p287
      %p289 = scmp.ne.s32.totalorder %s281, %s284
      %p290 = scmp.eq.s32.totalorder %s20, 0
      %p291 = por %p289, %p290
      %p292 = scmp.ne.s32.totalorder %s281, %s284
      %p293 = scmp.eq.s32.totalorder %s25, 1
      %p294 = por %p292, %p293
      %p295 = scmp.ne.s32.totalorder %s284, %s285
      %p296 = scmp.eq.s32.totalorder %s25, 0
      %p297 = por %p295, %p296
      %p298 = scmp.ne.s32.totalorder %s284, %s285
      %p299 = scmp.eq.s32.totalorder %s26, 1
      %p300 = por %p298, %p299
      %p302 = scmp.ne.s32.totalorder %s285, %s301
      %p303 = scmp.eq.s32.totalorder %s26, 0
      %p304 = por %p302, %p303
      %s305 = ssub.s32 %s20, %s27
      %p306 = scmp.eq.s32.totalorder %s305, 0
      %s308 = sadd.s32 %s307, 1
      %s309 = scalar_select %p306, %s307, %s308
      %p312 = pneg %p306
      %p313 = scmp.eq.s32.totalorder %s20, 1
      %p314 = por %p312, %p313
      %p315 = scmp.ne.s32.totalorder %s307, %s310
      %p316 = scmp.eq.s32.totalorder %s20, 0
      %p317 = por %p315, %p316
      %p318 = scmp.ne.s32.totalorder %s307, %s310
      %p319 = scmp.eq.s32.totalorder %s25, 1
      %p320 = por %p318, %p319
      %p321 = scmp.ne.s32.totalorder %s310, %s311
      %p322 = scmp.eq.s32.totalorder %s25, 0
      %p323 = por %p321, %p322
      %p324 = scmp.ne.s32.totalorder %s310, %s311
      %p325 = scmp.eq.s32.totalorder %s26, 1
      %p326 = por %p324, %p325
      %p328 = scmp.ne.s32.totalorder %s311, %s327
      %p329 = scmp.eq.s32.totalorder %s26, 0
      %p330 = por %p328, %p329
      %s332 = sadd.s32 %s331, 1
      %p335 = scmp.eq.s32.totalorder %s20, 1
      %p336 = scmp.ne.s32.totalorder %s331, %s333
      %p337 = scmp.eq.s32.totalorder %s20, 0
      %p338 = por %p336, %p337
      %p339 = scmp.ne.s32.totalorder %s331, %s333
      %p340 = scmp.eq.s32.totalorder %s25, 1
      %p341 = por %p339, %p340
      %p342 = scmp.ne.s32.totalorder %s333, %s334
      %p343 = scmp.eq.s32.totalorder %s25, 0
      %p344 = por %p342, %p343
      %p345 = scmp.ne.s32.totalorder %s333, %s334
      %p346 = scmp.eq.s32.totalorder %s26, 1
      %p347 = por %p345, %p346
      %p349 = scmp.ne.s32.totalorder %s334, %s348
      %p350 = scmp.eq.s32.totalorder %s26, 0
      %p351 = por %p349, %p350
      %p352 = scmp.le.s32.totalorder 1, %s20
      %p353 = scmp.lt.s32.totalorder %s20, 3
      %p354 = pnand %p352, %p353
      %p355 = pneg %p354
      // Predicated region
      $region9: #{_lambda_.1} parent=5 // pred_check
        _
      $region10: #{_lambda_.1} parent=5 // pred_check_branch
        %357 = sbr.rel (%p354) target = $region12
      $region11: #{_lambda_.1} parent=5 // pred_region
        %s358 = ssub.s32 %s20, 1
        // Predicated region
        $region13: #{_lambda_.1} parent=11 // pred_check
          %p359 = pneg %p41
        $region14: #{_lambda_.1} parent=11 // pred_check_branch
          %361 = sbr.rel (%p359) target = $region16
        $region15: #{_lambda_.1} parent=11 // pred_region
          _
        $region16: #{_lambda_.1} parent=11 // pred_fallthru
          _
        // Predicated region
        $region17: #{_lambda_.1} parent=11 // pred_check
          %p362 = pneg %p62
        $region18: #{_lambda_.1} parent=11 // pred_check_branch
          %364 = sbr.rel (%p362) target = $region20
        $region19: #{_lambda_.1} parent=11 // pred_region
          _
        $region20: #{_lambda_.1} parent=11 // pred_fallthru
          _
        // Predicated region
        $region21: #{_lambda_.1} parent=11 // pred_check
          %p365 = pneg %p83
        $region22: #{_lambda_.1} parent=11 // pred_check_branch
          %367 = sbr.rel (%p365) target = $region24
        $region23: #{_lambda_.1} parent=11 // pred_region
          _
        $region24: #{_lambda_.1} parent=11 // pred_fallthru
          _
        // Predicated region
        $region25: #{_lambda_.1} parent=11 // pred_check
          %p368 = pneg %p104
        $region26: #{_lambda_.1} parent=11 // pred_check_branch
          %370 = sbr.rel (%p368) target = $region28
        $region27: #{_lambda_.1} parent=11 // pred_region
          _
        $region28: #{_lambda_.1} parent=11 // pred_fallthru
          _
        // Predicated region
        $region29: #{_lambda_.1} parent=11 // pred_check
          %p371 = pneg %p125
        $region30: #{_lambda_.1} parent=11 // pred_check_branch
          %373 = sbr.rel (%p371) target = $region32
        $region31: #{_lambda_.1} parent=11 // pred_region
          _
        $region32: #{_lambda_.1} parent=11 // pred_fallthru
          _
        // Predicated region
        $region33: #{_lambda_.1} parent=11 // pred_check
          %p374 = pneg %p146
        $region34: #{_lambda_.1} parent=11 // pred_check_branch
          %376 = sbr.rel (%p374) target = $region36
        $region35: #{_lambda_.1} parent=11 // pred_region
          _
        $region36: #{_lambda_.1} parent=11 // pred_fallthru
          _
        // Predicated region
        $region37: #{_lambda_.1} parent=11 // pred_check
          %p377 = pneg %p167
        $region38: #{_lambda_.1} parent=11 // pred_check_branch
          %379 = sbr.rel (%p377) target = $region40
        $region39: #{_lambda_.1} parent=11 // pred_region
          _
        $region40: #{_lambda_.1} parent=11 // pred_fallthru
          _
      $region12: #{_lambda_.1} parent=5 // pred_fallthru
        _
      %p380 = scmp.lt.s32.totalorder %s20, 2
      // Predicated region
      $region41: #{_lambda_.1} parent=5 // pred_check
        %p381 = pneg %p380
      $region42: #{_lambda_.1} parent=5 // pred_check_branch
        %383 = sbr.rel (%p381) target = $region44
      $region43: #{_lambda_.1} parent=5 // pred_region
        // Predicated region
        $region45: #{_lambda_.1} parent=43 // pred_check
          %p384 = pneg %p187
        $region46: #{_lambda_.1} parent=43 // pred_check_branch
          %386 = sbr.rel (%p384) target = $region48
        $region47: #{_lambda_.1} parent=43 // pred_region
          %p387 = scmp.lt.s32.totalorder %s20, 1
          %s388 = scalar_select %p387, %s20, 1
          %s389 = smul.addr %s388, 4
          %s390 = smul.addr %s389, 4
          %s391 = scalar_lea.vmem %s7, %s390
        $region48: #{_lambda_.1} parent=43 // pred_fallthru
          _
        // Predicated region
        $region49: #{_lambda_.1} parent=43 // pred_check
          %p392 = pneg %p213
        $region50: #{_lambda_.1} parent=43 // pred_check_branch
          %394 = sbr.rel (%p392) target = $region52
        $region51: #{_lambda_.1} parent=43 // pred_region
          %p395 = scmp.lt.s32.totalorder %s20, 1
          %s396 = scalar_select %p395, %s20, 1
          %s397 = smul.addr %s396, 4
          %s398 = smul.addr %s397, 4
          %s399 = scalar_lea.vmem %s8, %s398
        $region52: #{_lambda_.1} parent=43 // pred_fallthru
          _
        // Predicated region
        $region53: #{_lambda_.1} parent=43 // pred_check
          %p400 = pneg %p239
        $region54: #{_lambda_.1} parent=43 // pred_check_branch
          %402 = sbr.rel (%p400) target = $region56
        $region55: #{_lambda_.1} parent=43 // pred_region
          %p403 = scmp.lt.s32.totalorder %s20, 1
          %s404 = scalar_select %p403, %s20, 1
          %s405 = smul.addr %s404, 4
          %s406 = smul.addr %s405, 4
          %s407 = scalar_lea.vmem %s9, %s406
        $region56: #{_lambda_.1} parent=43 // pred_fallthru
          _
        // Predicated region
        $region57: #{_lambda_.1} parent=43 // pred_check
          %p408 = pneg %p265
        $region58: #{_lambda_.1} parent=43 // pred_check_branch
          %410 = sbr.rel (%p408) target = $region60
        $region59: #{_lambda_.1} parent=43 // pred_region
          %p411 = scmp.lt.s32.totalorder %s20, 1
          %s412 = scalar_select %p411, %s20, 1
          %s413 = scalar_lea.vmem %s10, %s412
        $region60: #{_lambda_.1} parent=43 // pred_fallthru
          _
        // Predicated region
        $region61: #{_lambda_.1} parent=43 // pred_check
          %p414 = pneg %p291
        $region62: #{_lambda_.1} parent=43 // pred_check_branch
          %416 = sbr.rel (%p414) target = $region64
        $region63: #{_lambda_.1} parent=43 // pred_region
          %p417 = scmp.lt.s32.totalorder %s20, 1
          %s418 = scalar_select %p417, %s20, 1
          %s419 = smul.addr %s418, 8
          %s420 = smul.addr %s419, 4
          %s421 = scalar_lea.vmem %s11, %s420
        $region64: #{_lambda_.1} parent=43 // pred_fallthru
          _
        // Predicated region
        $region65: #{_lambda_.1} parent=43 // pred_check
          %p422 = pneg %p317
        $region66: #{_lambda_.1} parent=43 // pred_check_branch
          %424 = sbr.rel (%p422) target = $region68
        $region67: #{_lambda_.1} parent=43 // pred_region
          %p425 = scmp.lt.s32.totalorder %s20, 1
          %s426 = scalar_select %p425, %s20, 1
          %s427 = smul.addr %s426, 2
          %s428 = smul.addr %s427, 8
          %s429 = scalar_lea.vmem %s12, %s428
        $region68: #{_lambda_.1} parent=43 // pred_fallthru
          _
      $region44: #{_lambda_.1} parent=5 // pred_fallthru
        _
      %p430 = scmp.le.s32.totalorder 1, %s20
      %p431 = scmp.lt.s32.totalorder %s20, 3
      %p432 = pnand %p430, %p431
      %p433 = pneg %p432
      // Predicated region
      $region69: #{_lambda_.1} parent=5 // pred_check
        _
      $region70: #{_lambda_.1} parent=5 // pred_check_branch
        %435 = sbr.rel (%p432) target = $region72
      $region71: #{_lambda_.1} parent=5 // pred_region
        %s436 = ssub.s32 %s20, 1
        %p437 = pneg %p41
        %p438 = pneg %p38
        %p439 = pneg %p62
        %p440 = pneg %p59
        %p441 = pneg %p83
        %p442 = pneg %p80
        %p443 = pneg %p104
        %p444 = pneg %p101
        %p445 = pneg %p125
        %p446 = pneg %p122
        %p447 = pneg %p146
        %p448 = pneg %p143
        %p449 = pneg %p167
        %p450 = pneg %p164
        %p451 = scmp.lt.s32.totalorder %s25, 1
        %s452 = scalar_select %p451, %s25, 1
        %s453 = smul.addr %s452, 4
        %s454 = smul.addr %s453, 4
        %s455 = scalar_lea.vmem %s7, %s454
        %p456 = pneg %p193
        %p457 = pneg %p190
        %p458 = scmp.lt.s32.totalorder %s25, 1
        %s459 = scalar_select %p458, %s25, 1
        %s460 = smul.addr %s459, 4
        %s461 = smul.addr %s460, 4
        %s462 = scalar_lea.vmem %s8, %s461
        %p463 = pneg %p219
        %p464 = pneg %p216
        %p465 = scmp.lt.s32.totalorder %s25, 1
        %s466 = scalar_select %p465, %s25, 1
        %s467 = smul.addr %s466, 4
        %s468 = smul.addr %s467, 4
        %s469 = scalar_lea.vmem %s9, %s468
        %p470 = pneg %p245
        %p471 = pneg %p242
        %p472 = scmp.lt.s32.totalorder %s25, 1
        %s473 = scalar_select %p472, %s25, 1
        %s474 = scalar_lea.vmem %s10, %s473
        %p475 = pneg %p271
        %p476 = pneg %p268
        %p477 = scmp.lt.s32.totalorder %s25, 1
        %s478 = scalar_select %p477, %s25, 1
        %s479 = smul.addr %s478, 8
        %s480 = smul.addr %s479, 4
        %s481 = scalar_lea.vmem %s11, %s480
        %p482 = pneg %p297
        %p483 = pneg %p294
        %p484 = scmp.lt.s32.totalorder %s25, 1
        %s485 = scalar_select %p484, %s25, 1
        %s486 = smul.addr %s485, 2
        %s487 = smul.addr %s486, 8
        %s488 = scalar_lea.vmem %s12, %s487
        %p489 = pneg %p323
        %p490 = pneg %p320
        %p491 = pneg %p344
        %p492 = pneg %p341
        %p493 = scmp.lt.s32.totalorder %s25, 1
        %s494 = scalar_select %p493, %s25, 1
        %s495 = smul.addr %s494, 4
        %s496 = smul.addr %s495, 4
        %s497 = scalar_lea.vmem %s7, %s496
        %p498 = scmp.lt.s32.totalorder %s25, 1
        %s499 = scalar_select %p498, %s25, 1
        %s500 = smul.addr %s499, 4
        %s501 = smul.addr %s500, 4
        %s502 = scalar_lea.vmem %s8, %s501
        %p503 = scmp.lt.s32.totalorder %s25, 1
        %s504 = scalar_select %p503, %s25, 1
        %s505 = smul.addr %s504, 4
        %s506 = smul.addr %s505, 4
        %s507 = scalar_lea.vmem %s9, %s506
        %p508 = scmp.lt.s32.totalorder %s25, 1
        %s509 = scalar_select %p508, %s25, 1
        %s510 = scalar_lea.vmem %s10, %s509
        %p511 = scmp.lt.s32.totalorder %s25, 1
        %s512 = scalar_select %p511, %s25, 1
        %s513 = smul.addr %s512, 8
        %s514 = smul.addr %s513, 4
        %s515 = scalar_lea.vmem %s11, %s514
        %p516 = scmp.lt.s32.totalorder %s25, 1
        %s517 = scalar_select %p516, %s25, 1
        %s518 = smul.addr %s517, 2
        %s519 = smul.addr %s518, 8
        %s520 = scalar_lea.vmem %s12, %s519
        %p522 = scmp.eq.s32.totalorder %s25, 0
        // Predicated region
        $region73: #{_lambda_.1} parent=71 // pred_check
          %p523 = pneg %p522
        $region74: #{_lambda_.1} parent=71 // pred_check_branch
          %525 = sbr.rel (%p523) target = $region76
        $region75: #{_lambda_.1} parent=71 // pred_region
          %v526 = vld [vmem:[%s0] sm:$0xf]
          %v527 = vld [vmem:[%s0 + $0x4] sm:$0xf]
          %v528 = vld [vmem:[%s0 + $0x8] sm:$0xf]
          %v529 = vld [vmem:[%s0 + $0xc] sm:$0xf]
          %v530 = vld [vmem:[%s0 + $0x10] sm:$0x1]
          %v531 = vld [vmem:[%s1] sm:$0xf]
          %v532 = vld [vmem:[%s1 + $0x4] sm:$0xf]
          %v533 = vld [vmem:[%s1 + $0x8] sm:$0xf]
          %v534 = vld [vmem:[%s1 + $0xc] sm:$0xf]
          %v535 = vld [vmem:[%s1 + $0x10] sm:$0xf]
          %v536 = vld [vmem:[%s1 + $0x14] sm:$0xf]
          %v537 = vld [vmem:[%s2] sm:$0xff]
          %v538 = vld [vmem:[%s2 + $0x8] sm:$0xff]
          %v539 = vld [vmem:[%s2 + $0x10] sm:$0xff]
          %v540 = vld [vmem:[%s2 + $0x18] sm:$0xff]
          %v541 = vld [vmem:[%s2 + $0x20] sm:$0x3]
          %v547 = vunpack.c.l.b16 %v526
          %v548 = vunpack.c.l.b16 %v527
          %v549 = vunpack.c.l.b16 %v528
          %v550 = vunpack.c.l.b16 %v529
          %v551 = vunpack.c.l.b16 %v530
          %v552 = vpack.c.b16 %v548, %v547
          %v553 = vpack.c.b16 %v550, %v549
          %v554 = vpack.c.b16 %v551, %v551
          %v561 = vunpack.c.l.b16 %v531
          %v562 = vunpack.c.l.b16 %v532
          %v563 = vunpack.c.l.b16 %v533
          %v564 = vunpack.c.l.b16 %v534
          %v565 = vunpack.c.l.b16 %v535
          %v566 = vunpack.c.l.b16 %v536
          %v567 = vpack.c.b16 %v562, %v561
          %v568 = vpack.c.b16 %v564, %v563
          %v569 = vpack.c.b16 %v566, %v565
          %vm573 = vcmask 392192
          %v575 = vsel %vm573, %v552, 0
          %v578 = vsel %vm573, %v553, 0
          %v581 = vsel %vm573, %v554, 0
          %583 = vmatpush.bf16.msra.mxu0 0
          %584 = vmatpush.bf16.msra.mxu0 0
          %585 = vmatpush.bf16.msra.mxu0 0
          %586 = vmatpush.bf16.msra.mxu0 0
          %587 = vmatpush.bf16.msra.mxu0 0
          %588 = vmatpush.bf16.msra.mxu0 %v569
          %589 = vmatpush.bf16.msra.mxu0 %v568
          %590 = vmatpush.bf16.msra.mxu0 %v567
          %591 = vmatmul.bf16.gmra.mxu0 %v575
          %v592 = vpop.f32.mrf.mxu0
          %v593 = vadd.f32 %v537, %v592
          %v594 = vpop.f32.mrf.mxu0
          %v595 = vadd.f32 %v538, %v594
          %596 = vmatmul.bf16.gmra.mxu0 %v578
          %v597 = vpop.f32.mrf.mxu0
          %v598 = vadd.f32 %v539, %v597
          %v599 = vpop.f32.mrf.mxu0
          %v600 = vadd.f32 %v540, %v599
          %601 = vmatmul.bf16.gmra.mxu0 %v581
          %v602 = vpop.f32.mrf.mxu0
          %v603 = vadd.f32 %v541, %v602
          %v604 = vpop.f32.mrf.mxu0
          %605 = vdwg.mxu0
          %vm606 = vcmask 261120
          %607 = vst.msk [vmem:[#allocation2] sm:$0xff] %vm606, %v593
          %608 = vst.msk [vmem:[#allocation2 + $0x8] sm:$0xff] %vm606, %v595
          %609 = vst.msk [vmem:[#allocation2 + $0x10] sm:$0xff] %vm606, %v598
          %610 = vst.msk [vmem:[#allocation2 + $0x18] sm:$0xff] %vm606, %v600
          %vm611 = vcmask 254976
          %612 = vst.msk [vmem:[#allocation2 + $0x20] sm:$0x3] %vm611, %v603
        $region76: #{_lambda_.1} parent=71 // pred_fallthru
          _
        %v613 = vld [vmem:[#allocation2] sm:$0xff]
        %v614 = vld [vmem:[#allocation2 + $0x8] sm:$0xff]
        %v615 = vld [vmem:[#allocation2 + $0x10] sm:$0xff]
        %v616 = vld [vmem:[#allocation2 + $0x18] sm:$0xff]
        %v617 = vld [vmem:[#allocation2 + $0x20] sm:$0x3]
        %v618 = vpack.c.bf16 %v614, %v613
        %v619 = vpack.c.bf16 %v616, %v615
        %v620 = vpack.c.bf16 %v617, %v617
        %v621 = vld [vmem:[%s497] sm:$0xf]
        %v622 = vld [vmem:[%s497 + $0x4] sm:$0xf]
        %v623 = vld [vmem:[%s497 + $0x8] sm:$0xf]
        %v624 = vld [vmem:[%s497 + $0xc] sm:$0xf]
        %v629 = vunpack.c.l.b16 %v621
        %v630 = vunpack.c.l.b16 %v622
        %v631 = vunpack.c.l.b16 %v623
        %v632 = vunpack.c.l.b16 %v624
        %v633 = vpack.c.b16 %v630, %v629
        %v634 = vpack.c.b16 %v632, %v631
        %vm637 = vcmask 261120
        %v639 = vsel %vm637, %v618, 0
        %v642 = vsel %vm637, %v619, 0
        %v645 = vsel %vm637, %v620, 0
        %647 = vmatpush.bf16.msra.mxu0 0
        %648 = vmatpush.bf16.msra.mxu0 0
        %649 = vmatpush.bf16.msra.mxu0 0
        %650 = vmatpush.bf16.msra.mxu0 0
        %651 = vmatpush.bf16.msra.mxu0 0
        %652 = vmatpush.bf16.msra.mxu0 0
        %653 = vmatpush.bf16.msra.mxu0 %v634
        %654 = vmatpush.bf16.msra.mxu0 %v633
        %655 = vmatmul.bf16.gmra.mxu0 %v639
        %v656 = vpop.f32.mrf.mxu0
        %v657 = vadd.f32 0.0, %v656
        %v658 = vpop.f32.mrf.mxu0
        %v659 = vadd.f32 0.0, %v658
        %660 = vmatmul.bf16.gmra.mxu0 %v642
        %v661 = vpop.f32.mrf.mxu0
        %v662 = vadd.f32 0.0, %v661
        %v663 = vpop.f32.mrf.mxu0
        %v664 = vadd.f32 0.0, %v663
        %665 = vmatmul.bf16.gmra.mxu0 %v645
        %v666 = vpop.f32.mrf.mxu0
        %v667 = vadd.f32 0.0, %v666
        %v668 = vpop.f32.mrf.mxu0
        %669 = vdwg.mxu0
        %v670 = vld [vmem:[%s520] sm:$0x1]
        %v671 = vperm.slane %v670, 0
        %v672 = vadd.f32 %v657, %v671
        %v673 = vadd.f32 %v659, %v671
        %v674 = vadd.f32 %v662, %v671
        %v675 = vadd.f32 %v664, %v671
        %v676 = vadd.f32 %v667, %v671
        %v677 = vmul.f32 %v672, 0.35355338
        %v678 = vmul.f32 %v673, 0.35355338
        %v679 = vmul.f32 %v674, 0.35355338
        %v680 = vmul.f32 %v675, 0.35355338
        %v681 = vmul.f32 %v676, 0.35355338
        %682 = vst.msk [vmem:[#allocation3] sm:$0xff] %vm637, %v677
        %683 = vst.msk [vmem:[#allocation3 + $0x8] sm:$0xff] %vm637, %v678
        %684 = vst.msk [vmem:[#allocation3 + $0x10] sm:$0xff] %vm637, %v679
        %685 = vst.msk [vmem:[#allocation3 + $0x18] sm:$0xff] %vm637, %v680
        %vm686 = vcmask 254976
        %687 = vst.msk [vmem:[#allocation3 + $0x20] sm:$0x3] %vm686, %v681
        %v688 = vld [vmem:[%s520 + $0x1] sm:$0x1]
        %v689 = vperm.slane %v688, 0
        %691 = vrot.lane.b32.xlu0 %v689, 32
        %v692 = vpop.permute.xlu0 %691
        %v694 = vadd.f32 %v657, %v692
        %v695 = vadd.f32 %v659, %v692
        %v696 = vadd.f32 %v662, %v692
        %v697 = vadd.f32 %v664, %v692
        %v698 = vadd.f32 %v667, %v692
        %704 = vrot.lane.b32.xlu0 %v694, 96
        %v705 = vpop.permute.xlu0 %704
        %706 = vrot.lane.b32.xlu0 %v695, 96
        %v707 = vpop.permute.xlu0 %706
        %708 = vrot.lane.b32.xlu0 %v696, 96
        %v709 = vpop.permute.xlu0 %708
        %710 = vrot.lane.b32.xlu0 %v697, 96
        %v711 = vpop.permute.xlu0 %710
        %712 = vrot.lane.b32.xlu0 %v698, 96
        %v713 = vpop.permute.xlu0 %712
        %719 = vst.msk [vmem:[#allocation4] sm:$0xff] %vm637, %v705
        %720 = vst.msk [vmem:[#allocation4 + $0x8] sm:$0xff] %vm637, %v707
        %721 = vst.msk [vmem:[#allocation4 + $0x10] sm:$0xff] %vm637, %v709
        %722 = vst.msk [vmem:[#allocation4 + $0x18] sm:$0xff] %vm637, %v711
        %723 = vst.msk [vmem:[#allocation4 + $0x20] sm:$0x3] %vm686, %v713
        %v724 = vld [vmem:[%s520 + $0x2] sm:$0x1]
        %v725 = vperm.slane %v724, 0
        %727 = vrot.lane.b32.xlu0 %v725, 64
        %v728 = vpop.permute.xlu0 %727
        %v730 = vadd.f32 %v657, %v728
        %v731 = vadd.f32 %v659, %v728
        %v732 = vadd.f32 %v662, %v728
        %v733 = vadd.f32 %v664, %v728
        %v734 = vadd.f32 %v667, %v728
        %740 = vrot.lane.b32.xlu0 %v730, 64
        %v741 = vpop.permute.xlu0 %740
        %742 = vrot.lane.b32.xlu0 %v731, 64
        %v743 = vpop.permute.xlu0 %742
        %744 = vrot.lane.b32.xlu0 %v732, 64
        %v745 = vpop.permute.xlu0 %744
        %746 = vrot.lane.b32.xlu0 %v733, 64
        %v747 = vpop.permute.xlu0 %746
        %748 = vrot.lane.b32.xlu0 %v734, 64
        %v749 = vpop.permute.xlu0 %748
        %755 = vst.msk [vmem:[#allocation5] sm:$0xff] %vm637, %v741
        %756 = vst.msk [vmem:[#allocation5 + $0x8] sm:$0xff] %vm637, %v743
        %757 = vst.msk [vmem:[#allocation5 + $0x10] sm:$0xff] %vm637, %v745
        %758 = vst.msk [vmem:[#allocation5 + $0x18] sm:$0xff] %vm637, %v747
        %759 = vst.msk [vmem:[#allocation5 + $0x20] sm:$0x3] %vm686, %v749
        %v760 = vld [vmem:[%s3] sm:$0xf]
        %v761 = vld [vmem:[%s3 + $0x4] sm:$0xf]
        %v762 = vld [vmem:[%s3 + $0x8] sm:$0xf]
        %v763 = vld [vmem:[%s3 + $0xc] sm:$0xf]
        %v764 = vld [vmem:[#allocation3] sm:$0xff]
        %v765 = vld [vmem:[#allocation3 + $0x8] sm:$0xff]
        %v766 = vld [vmem:[#allocation3 + $0x10] sm:$0x1]
        %v767 = vld [vmem:[#allocation4] sm:$0xff]
        %v768 = vld [vmem:[#allocation4 + $0x8] sm:$0xff]
        %v769 = vld [vmem:[#allocation4 + $0x10] sm:$0x1]
        %v770 = vmul.f32 %v764, %v767
        %v771 = vmul.f32 %v765, %v768
        %v772 = vmul.f32 %v766, %v769
        %v773 = vpack.c.bf16 %v771, %v770
        %v774 = vpack.c.bf16 %v772, %v772
        %v779 = vunpack.c.l.b16 %v760
        %v780 = vunpack.c.l.b16 %v761
        %v781 = vunpack.c.l.b16 %v762
        %v782 = vunpack.c.l.b16 %v763
        %v783 = vpack.c.b16 %v780, %v779
        %v784 = vpack.c.b16 %v782, %v781
        %v788 = vsel %vm637, %v773, 0
        %v791 = vsel %vm637, %v774, 0
        %793 = vmatpush.bf16.msra.mxu0 0
        %794 = vmatpush.bf16.msra.mxu0 0
        %795 = vmatpush.bf16.msra.mxu0 0
        %796 = vmatpush.bf16.msra.mxu0 0
        %797 = vmatpush.bf16.msra.mxu0 0
        %798 = vmatpush.bf16.msra.mxu0 0
        %799 = vmatpush.bf16.msra.mxu0 %v784
        %800 = vmatpush.bf16.msra.mxu0 %v783
        %801 = vmatmul.bf16.gmra.mxu0 %v788
        %v802 = vpop.f32.mrf.mxu0
        %v803 = vadd.f32 0.0, %v802
        %v804 = vpop.f32.mrf.mxu0
        %v805 = vadd.f32 0.0, %v804
        %806 = vmatmul.bf16.gmra.mxu0 %v791
        %v807 = vpop.f32.mrf.mxu0
        %v808 = vadd.f32 0.0, %v807
        %v809 = vpop.f32.mrf.mxu0
        %810 = vdwg.mxu0
        %v811 = vld [vmem:[#allocation4 + $0x11] sm:$0xff]
        %v812 = vld [vmem:[#allocation4 + $0x19] sm:$0xff]
        %v813 = vld [vmem:[#allocation4 + $0x21] sm:$0x1]
        %v814 = vmul.f32 %v764, %v811
        %v815 = vmul.f32 %v765, %v812
        %v816 = vmul.f32 %v766, %v813
        %v817 = vpack.c.bf16 %v815, %v814
        %v818 = vpack.c.bf16 %v816, %v816
        %v820 = vsel %vm637, %v817, 0
        %v823 = vsel %vm637, %v818, 0
        %825 = vmatpush.bf16.msra.mxu0 0
        %826 = vmatpush.bf16.msra.mxu0 0
        %827 = vmatpush.bf16.msra.mxu0 0
        %828 = vmatpush.bf16.msra.mxu0 0
        %829 = vmatpush.bf16.msra.mxu0 0
        %830 = vmatpush.bf16.msra.mxu0 0
        %831 = vmatpush.bf16.msra.mxu0 %v784
        %832 = vmatpush.bf16.msra.mxu0 %v783
        %833 = vmatmul.bf16.gmra.mxu0 %v820
        %v834 = vpop.f32.mrf.mxu0
        %v835 = vadd.f32 0.0, %v834
        %v836 = vpop.f32.mrf.mxu0
        %v837 = vadd.f32 0.0, %v836
        %838 = vmatmul.bf16.gmra.mxu0 %v823
        %v839 = vpop.f32.mrf.mxu0
        %v840 = vadd.f32 0.0, %v839
        %v841 = vpop.f32.mrf.mxu0
        %842 = vdwg.mxu0
        %v843 = vmax.f32 %v803, %v835
        %v844 = vmax.f32 %v805, %v837
        %v845 = vmax.f32 %v808, %v840
        %v846 = vsub.f32 %v803, %v843
        %v847 = vsub.f32 %v805, %v844
        %v848 = vsub.f32 %v808, %v845
        %v849 = vmul.f32 %v846, 1.442695
        %v850 = vpow.pop %v849
        %v851 = vmul.f32 %v847, 1.442695
        %v852 = vpow.pop %v851
        %v853 = vmul.f32 %v848, 1.442695
        %v854 = vpow.pop %v853
        %v855 = vsub.f32 %v835, %v843
        %v856 = vsub.f32 %v837, %v844
        %v857 = vsub.f32 %v840, %v845
        %v858 = vmul.f32 %v855, 1.442695
        %v859 = vpow.pop %v858
        %v860 = vmul.f32 %v856, 1.442695
        %v861 = vpow.pop %v860
        %v862 = vmul.f32 %v857, 1.442695
        %v863 = vpow.pop %v862
        %v864 = vadd.f32 %v850, %v859
        %v865 = vadd.f32 %v852, %v861
        %v866 = vadd.f32 %v854, %v863
        %v867 = vrcp.pop %v864
        %v868 = vmul.f32 %v864, %v867
        %v869 = vsub.f32 1.0, %v868
        %v870 = vmul.f32 %v867, %v869
        %v871 = vadd.f32 %v867, %v870
        %vm872 = vweird.f32 %v864
        %vm873 = vweird.f32 %v867
        %vm874 = vmor %vm872, %vm873
        %v875 = vsel %vm874, %v867, %v871
        %v876 = vand.u32 2147483647, %v864
        %vm877 = vcmp.eq.f32.partialorder %v876, 8.507059e+37
        %v878 = vand.u32 %v864, 2147483648
        %v879 = vor.u32 1.1754944e-38, %v878
        %v880 = vsel %vm877, %v879, %v875
        %v881 = vmul.f32 1.0, %v880
        %v882 = vrcp.pop %v865
        %v883 = vmul.f32 %v865, %v882
        %v884 = vsub.f32 1.0, %v883
        %v885 = vmul.f32 %v882, %v884
        %v886 = vadd.f32 %v882, %v885
        %vm887 = vweird.f32 %v865
        %vm888 = vweird.f32 %v882
        %vm889 = vmor %vm887, %vm888
        %v890 = vsel %vm889, %v882, %v886
        %v891 = vand.u32 2147483647, %v865
        %vm892 = vcmp.eq.f32.partialorder %v891, 8.507059e+37
        %v893 = vand.u32 %v865, 2147483648
        %v894 = vor.u32 1.1754944e-38, %v893
        %v895 = vsel %vm892, %v894, %v890
        %v896 = vmul.f32 1.0, %v895
        %v897 = vrcp.pop %v866
        %v898 = vmul.f32 %v866, %v897
        %v899 = vsub.f32 1.0, %v898
        %v900 = vmul.f32 %v897, %v899
        %v901 = vadd.f32 %v897, %v900
        %vm902 = vweird.f32 %v866
        %vm903 = vweird.f32 %v897
        %vm904 = vmor %vm902, %vm903
        %v905 = vsel %vm904, %v897, %v901
        %v906 = vand.u32 2147483647, %v866
        %vm907 = vcmp.eq.f32.partialorder %v906, 8.507059e+37
        %v908 = vand.u32 %v866, 2147483648
        %v909 = vor.u32 1.1754944e-38, %v908
        %v910 = vsel %vm907, %v909, %v905
        %v911 = vmul.f32 1.0, %v910
        %v912 = vmul.f32 %v850, %v881
        %v913 = vmul.f32 %v852, %v896
        %v914 = vmul.f32 %v854, %v911
        %v915 = vld [vmem:[#allocation5] sm:$0xff]
        %v916 = vld [vmem:[#allocation5 + $0x8] sm:$0xff]
        %v917 = vld [vmem:[#allocation5 + $0x10] sm:$0x1]
        %v918 = vmul.f32 %v912, %v915
        %v919 = vmul.f32 %v913, %v916
        %v920 = vmul.f32 %v914, %v917
        %v921 = vmul.f32 %v859, %v881
        %v922 = vmul.f32 %v861, %v896
        %v923 = vmul.f32 %v863, %v911
        %v924 = vld [vmem:[#allocation5 + $0x11] sm:$0xff]
        %v925 = vld [vmem:[#allocation5 + $0x19] sm:$0xff]
        %v926 = vld [vmem:[#allocation5 + $0x21] sm:$0x1]
        %v927 = vmul.f32 %v921, %v924
        %v928 = vmul.f32 %v922, %v925
        %v929 = vmul.f32 %v923, %v926
        %v930 = vadd.f32 %v918, %v927
        %v931 = vadd.f32 %v919, %v928
        %v932 = vadd.f32 %v920, %v929
        %933 = vst.msk [vmem:[#allocation3] sm:$0xff] %vm637, %v930
        %934 = vst.msk [vmem:[#allocation3 + $0x8] sm:$0xff] %vm637, %v931
        %vm935 = vcmask 253952
        %936 = vst.msk [vmem:[#allocation3 + $0x10] sm:$0x1] %vm935, %v932
        %v937 = vld [vmem:[#allocation3 + $0x11] sm:$0xff]
        %v938 = vld [vmem:[#allocation3 + $0x19] sm:$0xff]
        %v939 = vld [vmem:[#allocation3 + $0x21] sm:$0x1]
        %v940 = vld [vmem:[#allocation4] sm:$0xff]
        %v941 = vld [vmem:[#allocation4 + $0x8] sm:$0xff]
        %v942 = vld [vmem:[#allocation4 + $0x10] sm:$0x1]
        %v943 = vmul.f32 %v937, %v940
        %v944 = vmul.f32 %v938, %v941
        %v945 = vmul.f32 %v939, %v942
        %v946 = vpack.c.bf16 %v944, %v943
        %v947 = vpack.c.bf16 %v945, %v945
        %v949 = vsel %vm637, %v946, 0
        %v952 = vsel %vm637, %v947, 0
        %954 = vmatpush.bf16.msra.mxu0 0
        %955 = vmatpush.bf16.msra.mxu0 0
        %956 = vmatpush.bf16.msra.mxu0 0
        %957 = vmatpush.bf16.msra.mxu0 0
        %958 = vmatpush.bf16.msra.mxu0 0
        %959 = vmatpush.bf16.msra.mxu0 0
        %960 = vmatpush.bf16.msra.mxu0 %v784
        %961 = vmatpush.bf16.msra.mxu0 %v783
        %962 = vmatmul.bf16.gmra.mxu0 %v949
        %v963 = vpop.f32.mrf.mxu0
        %v964 = vadd.f32 0.0, %v963
        %v965 = vpop.f32.mrf.mxu0
        %v966 = vadd.f32 0.0, %v965
        %967 = vmatmul.bf16.gmra.mxu0 %v952
        %v968 = vpop.f32.mrf.mxu0
        %v969 = vadd.f32 0.0, %v968
        %v970 = vpop.f32.mrf.mxu0
        %971 = vdwg.mxu0
        %v972 = vld [vmem:[#allocation4 + $0x11] sm:$0xff]
        %v973 = vld [vmem:[#allocation4 + $0x19] sm:$0xff]
        %v974 = vld [vmem:[#allocation4 + $0x21] sm:$0x1]
        %v975 = vmul.f32 %v937, %v972
        %v976 = vmul.f32 %v938, %v973
        %v977 = vmul.f32 %v939, %v974
        %v978 = vpack.c.bf16 %v976, %v975
        %v979 = vpack.c.bf16 %v977, %v977
        %v981 = vsel %vm637, %v978, 0
        %v984 = vsel %vm637, %v979, 0
        %986 = vmatpush.bf16.msra.mxu0 0
        %987 = vmatpush.bf16.msra.mxu0 0
        %988 = vmatpush.bf16.msra.mxu0 0
        %989 = vmatpush.bf16.msra.mxu0 0
        %990 = vmatpush.bf16.msra.mxu0 0
        %991 = vmatpush.bf16.msra.mxu0 0
        %992 = vmatpush.bf16.msra.mxu0 %v784
        %993 = vmatpush.bf16.msra.mxu0 %v783
        %994 = vmatmul.bf16.gmra.mxu0 %v981
        %v995 = vpop.f32.mrf.mxu0
        %v996 = vadd.f32 0.0, %v995
        %v997 = vpop.f32.mrf.mxu0
        %v998 = vadd.f32 0.0, %v997
        %999 = vmatmul.bf16.gmra.mxu0 %v984
        %v1000 = vpop.f32.mrf.mxu0
        %v1001 = vadd.f32 0.0, %v1000
        %v1002 = vpop.f32.mrf.mxu0
        %1003 = vdwg.mxu0
        %v1004 = vmax.f32 %v964, %v996
        %v1005 = vmax.f32 %v966, %v998
        %v1006 = vmax.f32 %v969, %v1001
        %v1007 = vsub.f32 %v964, %v1004
        %v1008 = vsub.f32 %v966, %v1005
        %v1009 = vsub.f32 %v969, %v1006
        %v1010 = vmul.f32 %v1007, 1.442695
        %v1011 = vpow.pop %v1010
        %v1012 = vmul.f32 %v1008, 1.442695
        %v1013 = vpow.pop %v1012
        %v1014 = vmul.f32 %v1009, 1.442695
        %v1015 = vpow.pop %v1014
        %v1016 = vsub.f32 %v996, %v1004
        %v1017 = vsub.f32 %v998, %v1005
        %v1018 = vsub.f32 %v1001, %v1006
        %v1019 = vmul.f32 %v1016, 1.442695
        %v1020 = vpow.pop %v1019
        %v1021 = vmul.f32 %v1017, 1.442695
        %v1022 = vpow.pop %v1021
        %v1023 = vmul.f32 %v1018, 1.442695
        %v1024 = vpow.pop %v1023
        %v1025 = vadd.f32 %v1011, %v1020
        %v1026 = vadd.f32 %v1013, %v1022
        %v1027 = vadd.f32 %v1015, %v1024
        %v1028 = vrcp.pop %v1025
        %v1029 = vmul.f32 %v1025, %v1028
        %v1030 = vsub.f32 1.0, %v1029
        %v1031 = vmul.f32 %v1028, %v1030
        %v1032 = vadd.f32 %v1028, %v1031
        %vm1033 = vweird.f32 %v1025
        %vm1034 = vweird.f32 %v1028
        %vm1035 = vmor %vm1033, %vm1034
        %v1036 = vsel %vm1035, %v1028, %v1032
        %v1037 = vand.u32 2147483647, %v1025
        %vm1038 = vcmp.eq.f32.partialorder %v1037, 8.507059e+37
        %v1039 = vand.u32 %v1025, 2147483648
        %v1040 = vor.u32 1.1754944e-38, %v1039
        %v1041 = vsel %vm1038, %v1040, %v1036
        %v1042 = vmul.f32 1.0, %v1041
        %v1043 = vrcp.pop %v1026
        %v1044 = vmul.f32 %v1026, %v1043
        %v1045 = vsub.f32 1.0, %v1044
        %v1046 = vmul.f32 %v1043, %v1045
        %v1047 = vadd.f32 %v1043, %v1046
        %vm1048 = vweird.f32 %v1026
        %vm1049 = vweird.f32 %v1043
        %vm1050 = vmor %vm1048, %vm1049
        %v1051 = vsel %vm1050, %v1043, %v1047
        %v1052 = vand.u32 2147483647, %v1026
        %vm1053 = vcmp.eq.f32.partialorder %v1052, 8.507059e+37
        %v1054 = vand.u32 %v1026, 2147483648
        %v1055 = vor.u32 1.1754944e-38, %v1054
        %v1056 = vsel %vm1053, %v1055, %v1051
        %v1057 = vmul.f32 1.0, %v1056
        %v1058 = vrcp.pop %v1027
        %v1059 = vmul.f32 %v1027, %v1058
        %v1060 = vsub.f32 1.0, %v1059
        %v1061 = vmul.f32 %v1058, %v1060
        %v1062 = vadd.f32 %v1058, %v1061
        %vm1063 = vweird.f32 %v1027
        %vm1064 = vweird.f32 %v1058
        %vm1065 = vmor %vm1063, %vm1064
        %v1066 = vsel %vm1065, %v1058, %v1062
        %v1067 = vand.u32 2147483647, %v1027
        %vm1068 = vcmp.eq.f32.partialorder %v1067, 8.507059e+37
        %v1069 = vand.u32 %v1027, 2147483648
        %v1070 = vor.u32 1.1754944e-38, %v1069
        %v1071 = vsel %vm1068, %v1070, %v1066
        %v1072 = vmul.f32 1.0, %v1071
        %v1073 = vmul.f32 %v1011, %v1042
        %v1074 = vmul.f32 %v1013, %v1057
        %v1075 = vmul.f32 %v1015, %v1072
        %v1076 = vld [vmem:[#allocation5] sm:$0xff]
        %v1077 = vld [vmem:[#allocation5 + $0x8] sm:$0xff]
        %v1078 = vld [vmem:[#allocation5 + $0x10] sm:$0x1]
        %v1079 = vmul.f32 %v1073, %v1076
        %v1080 = vmul.f32 %v1074, %v1077
        %v1081 = vmul.f32 %v1075, %v1078
        %v1082 = vmul.f32 %v1020, %v1042
        %v1083 = vmul.f32 %v1022, %v1057
        %v1084 = vmul.f32 %v1024, %v1072
        %v1085 = vld [vmem:[#allocation5 + $0x11] sm:$0xff]
        %v1086 = vld [vmem:[#allocation5 + $0x19] sm:$0xff]
        %v1087 = vld [vmem:[#allocation5 + $0x21] sm:$0x1]
        %v1088 = vmul.f32 %v1082, %v1085
        %v1089 = vmul.f32 %v1083, %v1086
        %v1090 = vmul.f32 %v1084, %v1087
        %v1091 = vadd.f32 %v1079, %v1088
        %v1092 = vadd.f32 %v1080, %v1089
        %v1093 = vadd.f32 %v1081, %v1090
        %1094 = vst.msk [vmem:[#allocation3 + $0x11] sm:$0xff] %vm637, %v1091
        %1095 = vst.msk [vmem:[#allocation3 + $0x19] sm:$0xff] %vm637, %v1092
        %1096 = vst.msk [vmem:[#allocation3 + $0x21] sm:$0x1] %vm935, %v1093
        %v1097 = vld [vmem:[#allocation3] sm:$0xff]
        %v1098 = vld [vmem:[#allocation3 + $0x8] sm:$0xff]
        %v1099 = vld [vmem:[#allocation3 + $0x10] sm:$0xff]
        %v1100 = vld [vmem:[#allocation3 + $0x18] sm:$0xff]
        %v1101 = vld [vmem:[#allocation3 + $0x20] sm:$0x3]
        %v1102 = vpack.c.bf16 %v1098, %v1097
        %v1103 = vpack.c.bf16 %v1100, %v1099
        %v1104 = vpack.c.bf16 %v1101, %v1101
        %v1105 = vld [vmem:[%s502] sm:$0xf]
        %v1106 = vld [vmem:[%s502 + $0x4] sm:$0xf]
        %v1107 = vld [vmem:[%s502 + $0x8] sm:$0xf]
        %v1108 = vld [vmem:[%s502 + $0xc] sm:$0xf]
        %v1109 = vld [vmem:[%s520 + $0x3] sm:$0x1]
        %v1110 = vperm.slane %v1109, 0
        %v1115 = vunpack.c.l.b16 %v1105
        %v1116 = vunpack.c.l.b16 %v1106
        %v1117 = vunpack.c.l.b16 %v1107
        %v1118 = vunpack.c.l.b16 %v1108
        %v1119 = vpack.c.b16 %v1116, %v1115
        %v1120 = vpack.c.b16 %v1118, %v1117
        %v1124 = vsel %vm637, %v1102, 0
        %v1127 = vsel %vm637, %v1103, 0
        %v1130 = vsel %vm637, %v1104, 0
        %1132 = vmatpush.bf16.msra.mxu0 0
        %1133 = vmatpush.bf16.msra.mxu0 0
        %1134 = vmatpush.bf16.msra.mxu0 0
        %1135 = vmatpush.bf16.msra.mxu0 0
        %1136 = vmatpush.bf16.msra.mxu0 0
        %1137 = vmatpush.bf16.msra.mxu0 0
        %1138 = vmatpush.bf16.msra.mxu0 %v1120
        %1139 = vmatpush.bf16.msra.mxu0 %v1119
        %1140 = vmatmul.bf16.gmra.mxu0 %v1124
        %v1141 = vpop.f32.mrf.mxu0
        %v1142 = vadd.f32 %v1110, %v1141
        %v1143 = vpop.f32.mrf.mxu0
        %v1144 = vadd.f32 %v1110, %v1143
        %1145 = vmatmul.bf16.gmra.mxu0 %v1127
        %v1146 = vpop.f32.mrf.mxu0
        %v1147 = vadd.f32 %v1110, %v1146
        %v1148 = vpop.f32.mrf.mxu0
        %v1149 = vadd.f32 %v1110, %v1148
        %1150 = vmatmul.bf16.gmra.mxu0 %v1130
        %v1151 = vpop.f32.mrf.mxu0
        %v1152 = vadd.f32 %v1110, %v1151
        %v1153 = vpop.f32.mrf.mxu0
        %1154 = vdwg.mxu0
        %v1155 = vadd.f32 %v613, %v1142
        %v1156 = vadd.f32 %v614, %v1144
        %v1157 = vadd.f32 %v615, %v1147
        %v1158 = vadd.f32 %v616, %v1149
        %v1159 = vadd.f32 %v617, %v1152
        %v1160 = vld [vmem:[%s520 + $0x4] sm:$0x1]
        %v1161 = vld [vmem:[%s520 + $0x5] sm:$0x1]
        %v1162 = vsel %vm637, %v1155, 0.0
        %1163 = vadd.xlane.f32.xlu0 %v1162
        %v1164 = vpop.xlane.xlu0 %1163
        %v1165 = vsel %vm637, %v1156, 0.0
        %1166 = vadd.xlane.f32.xlu0 %v1165
        %v1167 = vpop.xlane.xlu0 %1166
        %v1168 = vsel %vm637, %v1157, 0.0
        %1169 = vadd.xlane.f32.xlu0 %v1168
        %v1170 = vpop.xlane.xlu0 %1169
        %v1171 = vsel %vm637, %v1158, 0.0
        %1172 = vadd.xlane.f32.xlu0 %v1171
        %v1173 = vpop.xlane.xlu0 %1172
        %v1174 = vsel %vm686, %v1159, 0.0
        %1175 = vadd.xlane.f32.xlu0 %v1174
        %v1176 = vpop.xlane.xlu0 %1175
        %v1177 = vrcp.pop 32.0
        %v1178 = vmul.f32 32.0, %v1177
        %v1179 = vsub.f32 1.0, %v1178
        %v1180 = vmul.f32 %v1177, %v1179
        %v1181 = vadd.f32 %v1177, %v1180
        %vm1182 = vweird.f32 %v1177
        %v1183 = vsel %vm1182, %v1177, %v1181
        %v1184 = vmul.f32 %v1164, %v1183
        %v1185 = vmul.f32 %v1167, %v1183
        %v1186 = vmul.f32 %v1170, %v1183
        %v1187 = vmul.f32 %v1173, %v1183
        %v1188 = vmul.f32 %v1176, %v1183
        %v1189 = vsub.f32 %v1155, %v1184
        %v1190 = vsub.f32 %v1156, %v1185
        %v1191 = vsub.f32 %v1157, %v1186
        %v1192 = vsub.f32 %v1158, %v1187
        %v1193 = vsub.f32 %v1159, %v1188
        %v1194 = vmul.f32 %v1189, %v1189
        %v1195 = vmul.f32 %v1190, %v1190
        %v1196 = vmul.f32 %v1191, %v1191
        %v1197 = vmul.f32 %v1192, %v1192
        %v1198 = vmul.f32 %v1193, %v1193
        %v1199 = vsel %vm637, %v1194, 0.0
        %1200 = vadd.xlane.f32.xlu0 %v1199
        %v1201 = vpop.xlane.xlu0 %1200
        %v1202 = vsel %vm637, %v1195, 0.0
        %1203 = vadd.xlane.f32.xlu0 %v1202
        %v1204 = vpop.xlane.xlu0 %1203
        %v1205 = vsel %vm637, %v1196, 0.0
        %1206 = vadd.xlane.f32.xlu0 %v1205
        %v1207 = vpop.xlane.xlu0 %1206
        %v1208 = vsel %vm637, %v1197, 0.0
        %1209 = vadd.xlane.f32.xlu0 %v1208
        %v1210 = vpop.xlane.xlu0 %1209
        %v1211 = vsel %vm686, %v1198, 0.0
        %1212 = vadd.xlane.f32.xlu0 %v1211
        %v1213 = vpop.xlane.xlu0 %1212
        %v1214 = vmul.f32 %v1201, %v1183
        %v1215 = vmul.f32 %v1204, %v1183
        %v1216 = vmul.f32 %v1207, %v1183
        %v1217 = vmul.f32 %v1210, %v1183
        %v1218 = vmul.f32 %v1213, %v1183
        %v1219 = vadd.f32 %v1214, 1e-05
        %v1220 = vadd.f32 %v1215, 1e-05
        %v1221 = vadd.f32 %v1216, 1e-05
        %v1222 = vadd.f32 %v1217, 1e-05
        %v1223 = vadd.f32 %v1218, 1e-05
        %v1224 = vrsqrt.pop %v1219
        %v1225 = vmul.f32 %v1224, %v1219
        %v1226 = vmul.f32 %v1225, %v1224
        %v1227 = vmul.f32 0.5, %v1226
        %v1228 = vsub.f32 1.5, %v1227
        %v1229 = vmul.f32 %v1224, %v1228
        %vm1230 = vweird.f32 %v1219
        %vm1231 = vweird.f32 %v1224
        %vm1232 = vmor %vm1230, %vm1231
        %v1233 = vsel %vm1232, %v1224, %v1229
        %v1234 = vrsqrt.pop %v1220
        %v1235 = vmul.f32 %v1234, %v1220
        %v1236 = vmul.f32 %v1235, %v1234
        %v1237 = vmul.f32 0.5, %v1236
        %v1238 = vsub.f32 1.5, %v1237
        %v1239 = vmul.f32 %v1234, %v1238
        %vm1240 = vweird.f32 %v1220
        %vm1241 = vweird.f32 %v1234
        %vm1242 = vmor %vm1240, %vm1241
        %v1243 = vsel %vm1242, %v1234, %v1239
        %v1244 = vrsqrt.pop %v1221
        %v1245 = vmul.f32 %v1244, %v1221
        %v1246 = vmul.f32 %v1245, %v1244
        %v1247 = vmul.f32 0.5, %v1246
        %v1248 = vsub.f32 1.5, %v1247
        %v1249 = vmul.f32 %v1244, %v1248
        %vm1250 = vweird.f32 %v1221
        %vm1251 = vweird.f32 %v1244
        %vm1252 = vmor %vm1250, %vm1251
        %v1253 = vsel %vm1252, %v1244, %v1249
        %v1254 = vrsqrt.pop %v1222
        %v1255 = vmul.f32 %v1254, %v1222
        %v1256 = vmul.f32 %v1255, %v1254
        %v1257 = vmul.f32 0.5, %v1256
        %v1258 = vsub.f32 1.5, %v1257
        %v1259 = vmul.f32 %v1254, %v1258
        %vm1260 = vweird.f32 %v1222
        %vm1261 = vweird.f32 %v1254
        %vm1262 = vmor %vm1260, %vm1261
        %v1263 = vsel %vm1262, %v1254, %v1259
        %v1264 = vrsqrt.pop %v1223
        %v1265 = vmul.f32 %v1264, %v1223
        %v1266 = vmul.f32 %v1265, %v1264
        %v1267 = vmul.f32 0.5, %v1266
        %v1268 = vsub.f32 1.5, %v1267
        %v1269 = vmul.f32 %v1264, %v1268
        %vm1270 = vweird.f32 %v1223
        %vm1271 = vweird.f32 %v1264
        %vm1272 = vmor %vm1270, %vm1271
        %v1273 = vsel %vm1272, %v1264, %v1269
        %v1274 = vmul.f32 %v1189, %v1233
        %v1275 = vmul.f32 %v1190, %v1243
        %v1276 = vmul.f32 %v1191, %v1253
        %v1277 = vmul.f32 %v1192, %v1263
        %v1278 = vmul.f32 %v1193, %v1273
        %v1279 = vperm.slane %v1160, 0
        %v1280 = vmul.f32 %v1274, %v1279
        %v1281 = vmul.f32 %v1275, %v1279
        %v1282 = vmul.f32 %v1276, %v1279
        %v1283 = vmul.f32 %v1277, %v1279
        %v1284 = vmul.f32 %v1278, %v1279
        %v1285 = vperm.slane %v1161, 0
        %v1286 = vadd.f32 %v1280, %v1285
        %v1287 = vadd.f32 %v1281, %v1285
        %v1288 = vadd.f32 %v1282, %v1285
        %v1289 = vadd.f32 %v1283, %v1285
        %v1290 = vadd.f32 %v1284, %v1285
        %v1291 = vpack.c.bf16 %v1287, %v1286
        %v1292 = vpack.c.bf16 %v1289, %v1288
        %v1293 = vpack.c.bf16 %v1290, %v1290
        %v1294 = vld [vmem:[%s507] sm:$0xf]
        %v1295 = vld [vmem:[%s507 + $0x4] sm:$0xf]
        %v1296 = vld [vmem:[%s507 + $0x8] sm:$0xf]
        %v1297 = vld [vmem:[%s507 + $0xc] sm:$0xf]
        %v1298 = vld [vmem:[%s510] sm:$0x1]
        %v1300 = vperm.slane %v1298, 0
        %v1306 = vunpack.c.l.b16 %v1294
        %v1307 = vunpack.c.l.b16 %v1295
        %v1308 = vunpack.c.l.b16 %v1296
        %v1309 = vunpack.c.l.b16 %v1297
        %v1310 = vpack.c.b16 %v1307, %v1306
        %v1311 = vpack.c.b16 %v1309, %v1308
        %v1315 = vsel %vm637, %v1291, 0
        %v1318 = vsel %vm637, %v1292, 0
        %v1321 = vsel %vm637, %v1293, 0
        %1323 = vmatpush.bf16.msra.mxu0 0
        %1324 = vmatpush.bf16.msra.mxu0 0
        %1325 = vmatpush.bf16.msra.mxu0 0
        %1326 = vmatpush.bf16.msra.mxu0 0
        %1327 = vmatpush.bf16.msra.mxu0 0
        %1328 = vmatpush.bf16.msra.mxu0 0
        %1329 = vmatpush.bf16.msra.mxu0 %v1311
        %1330 = vmatpush.bf16.msra.mxu0 %v1310
        %1331 = vmatmul.bf16.gmra.mxu0 %v1315
        %v1332 = vpop.f32.mrf.mxu0
        %v1333 = vadd.f32 %v1300, %v1332
        %v1334 = vpop.f32.mrf.mxu0
        %v1335 = vadd.f32 %v1300, %v1334
        %1336 = vmatmul.bf16.gmra.mxu0 %v1318
        %v1337 = vpop.f32.mrf.mxu0
        %v1338 = vadd.f32 %v1300, %v1337
        %v1339 = vpop.f32.mrf.mxu0
        %v1340 = vadd.f32 %v1300, %v1339
        %1341 = vmatmul.bf16.gmra.mxu0 %v1321
        %v1342 = vpop.f32.mrf.mxu0
        %v1343 = vadd.f32 %v1300, %v1342
        %v1344 = vpop.f32.mrf.mxu0
        %1345 = vdwg.mxu0
        %v1346 = vmul.f32 %v1333, 0.5
        %v1347 = vmul.f32 %v1335, 0.5
        %v1348 = vmul.f32 %v1338, 0.5
        %v1349 = vmul.f32 %v1340, 0.5
        %v1350 = vmul.f32 %v1343, 0.5
        %v1351 = vmul.f32 %v1333, 0.70710677
        %v1352 = vmul.f32 %v1335, 0.70710677
        %v1353 = vmul.f32 %v1338, 0.70710677
        %v1354 = vmul.f32 %v1340, 0.70710677
        %v1355 = vmul.f32 %v1343, 0.70710677
        %v1356 = vand.u32 2147483647, %v1351
        %v1357 = vand.u32 2147483647, %v1352
        %v1358 = vand.u32 2147483647, %v1353
        %v1359 = vand.u32 2147483647, %v1354
        %v1360 = vand.u32 2147483647, %v1355
        %v1361 = vmul.f32 %v1356, 0.3275911
        %v1362 = vmul.f32 %v1357, 0.3275911
        %v1363 = vmul.f32 %v1358, 0.3275911
        %v1364 = vmul.f32 %v1359, 0.3275911
        %v1365 = vmul.f32 %v1360, 0.3275911
        %v1366 = vadd.f32 %v1361, 1.0
        %v1367 = vadd.f32 %v1362, 1.0
        %v1368 = vadd.f32 %v1363, 1.0
        %v1369 = vadd.f32 %v1364, 1.0
        %v1370 = vadd.f32 %v1365, 1.0
        %v1371 = vrcp.pop %v1366
        %v1372 = vmul.f32 %v1366, %v1371
        %v1373 = vsub.f32 1.0, %v1372
        %v1374 = vmul.f32 %v1371, %v1373
        %v1375 = vadd.f32 %v1371, %v1374
        %vm1376 = vweird.f32 %v1366
        %vm1377 = vweird.f32 %v1371
        %vm1378 = vmor %vm1376, %vm1377
        %v1379 = vsel %vm1378, %v1371, %v1375
        %v1380 = vand.u32 2147483647, %v1366
        %vm1381 = vcmp.eq.f32.partialorder %v1380, 8.507059e+37
        %v1382 = vand.u32 %v1366, 2147483648
        %v1383 = vor.u32 1.1754944e-38, %v1382
        %v1384 = vsel %vm1381, %v1383, %v1379
        %v1385 = vmul.f32 1.0, %v1384
        %v1386 = vrcp.pop %v1367
        %v1387 = vmul.f32 %v1367, %v1386
        %v1388 = vsub.f32 1.0, %v1387
        %v1389 = vmul.f32 %v1386, %v1388
        %v1390 = vadd.f32 %v1386, %v1389
        %vm1391 = vweird.f32 %v1367
        %vm1392 = vweird.f32 %v1386
        %vm1393 = vmor %vm1391, %vm1392
        %v1394 = vsel %vm1393, %v1386, %v1390
        %v1395 = vand.u32 2147483647, %v1367
        %vm1396 = vcmp.eq.f32.partialorder %v1395, 8.507059e+37
        %v1397 = vand.u32 %v1367, 2147483648
        %v1398 = vor.u32 1.1754944e-38, %v1397
        %v1399 = vsel %vm1396, %v1398, %v1394
        %v1400 = vmul.f32 1.0, %v1399
        %v1401 = vrcp.pop %v1368
        %v1402 = vmul.f32 %v1368, %v1401
        %v1403 = vsub.f32 1.0, %v1402
        %v1404 = vmul.f32 %v1401, %v1403
        %v1405 = vadd.f32 %v1401, %v1404
        %vm1406 = vweird.f32 %v1368
        %vm1407 = vweird.f32 %v1401
        %vm1408 = vmor %vm1406, %vm1407
        %v1409 = vsel %vm1408, %v1401, %v1405
        %v1410 = vand.u32 2147483647, %v1368
        %vm1411 = vcmp.eq.f32.partialorder %v1410, 8.507059e+37
        %v1412 = vand.u32 %v1368, 2147483648
        %v1413 = vor.u32 1.1754944e-38, %v1412
        %v1414 = vsel %vm1411, %v1413, %v1409
        %v1415 = vmul.f32 1.0, %v1414
        %v1416 = vrcp.pop %v1369
        %v1417 = vmul.f32 %v1369, %v1416
        %v1418 = vsub.f32 1.0, %v1417
        %v1419 = vmul.f32 %v1416, %v1418
        %v1420 = vadd.f32 %v1416, %v1419
        %vm1421 = vweird.f32 %v1369
        %vm1422 = vweird.f32 %v1416
        %vm1423 = vmor %vm1421, %vm1422
        %v1424 = vsel %vm1423, %v1416, %v1420
        %v1425 = vand.u32 2147483647, %v1369
        %vm1426 = vcmp.eq.f32.partialorder %v1425, 8.507059e+37
        %v1427 = vand.u32 %v1369, 2147483648
        %v1428 = vor.u32 1.1754944e-38, %v1427
        %v1429 = vsel %vm1426, %v1428, %v1424
        %v1430 = vmul.f32 1.0, %v1429
        %v1431 = vrcp.pop %v1370
        %v1432 = vmul.f32 %v1370, %v1431
        %v1433 = vsub.f32 1.0, %v1432
        %v1434 = vmul.f32 %v1431, %v1433
        %v1435 = vadd.f32 %v1431, %v1434
        %vm1436 = vweird.f32 %v1370
        %vm1437 = vweird.f32 %v1431
        %vm1438 = vmor %vm1436, %vm1437
        %v1439 = vsel %vm1438, %v1431, %v1435
        %v1440 = vand.u32 2147483647, %v1370
        %vm1441 = vcmp.eq.f32.partialorder %v1440, 8.507059e+37
        %v1442 = vand.u32 %v1370, 2147483648
        %v1443 = vor.u32 1.1754944e-38, %v1442
        %v1444 = vsel %vm1441, %v1443, %v1439
        %v1445 = vmul.f32 1.0, %v1444
        %v1446 = vmul.f32 %v1385, 1.0614054
        %v1447 = vmul.f32 %v1400, 1.0614054
        %v1448 = vmul.f32 %v1415, 1.0614054
        %v1449 = vmul.f32 %v1430, 1.0614054
        %v1450 = vmul.f32 %v1445, 1.0614054
        %v1451 = vadd.f32 %v1446, -1.4531521
        %v1452 = vadd.f32 %v1447, -1.4531521
        %v1453 = vadd.f32 %v1448, -1.4531521
        %v1454 = vadd.f32 %v1449, -1.4531521
        %v1455 = vadd.f32 %v1450, -1.4531521
        %v1456 = vmul.f32 %v1451, %v1385
        %v1457 = vmul.f32 %v1452, %v1400
        %v1458 = vmul.f32 %v1453, %v1415
        %v1459 = vmul.f32 %v1454, %v1430
        %v1460 = vmul.f32 %v1455, %v1445
        %v1461 = vadd.f32 %v1456, 1.4214138
        %v1462 = vadd.f32 %v1457, 1.4214138
        %v1463 = vadd.f32 %v1458, 1.4214138
        %v1464 = vadd.f32 %v1459, 1.4214138
        %v1465 = vadd.f32 %v1460, 1.4214138
        %v1466 = vmul.f32 %v1461, %v1385
        %v1467 = vmul.f32 %v1462, %v1400
        %v1468 = vmul.f32 %v1463, %v1415
        %v1469 = vmul.f32 %v1464, %v1430
        %v1470 = vmul.f32 %v1465, %v1445
        %v1471 = vadd.f32 %v1466, -0.28449672
        %v1472 = vadd.f32 %v1467, -0.28449672
        %v1473 = vadd.f32 %v1468, -0.28449672
        %v1474 = vadd.f32 %v1469, -0.28449672
        %v1475 = vadd.f32 %v1470, -0.28449672
        %v1476 = vmul.f32 %v1471, %v1385
        %v1477 = vmul.f32 %v1472, %v1400
        %v1478 = vmul.f32 %v1473, %v1415
        %v1479 = vmul.f32 %v1474, %v1430
        %v1480 = vmul.f32 %v1475, %v1445
        %v1481 = vadd.f32 %v1476, 0.2548296
        %v1482 = vadd.f32 %v1477, 0.2548296
        %v1483 = vadd.f32 %v1478, 0.2548296
        %v1484 = vadd.f32 %v1479, 0.2548296
        %v1485 = vadd.f32 %v1480, 0.2548296
        %v1486 = vmul.f32 %v1481, %v1385
        %v1487 = vmul.f32 %v1482, %v1400
        %v1488 = vmul.f32 %v1483, %v1415
        %v1489 = vmul.f32 %v1484, %v1430
        %v1490 = vmul.f32 %v1485, %v1445
        %v1491 = vsub.f32 0.0, %v1356
        %v1492 = vsub.f32 0.0, %v1357
        %v1493 = vsub.f32 0.0, %v1358
        %v1494 = vsub.f32 0.0, %v1359
        %v1495 = vsub.f32 0.0, %v1360
        %v1496 = vmul.f32 %v1491, %v1356
        %v1497 = vmul.f32 %v1492, %v1357
        %v1498 = vmul.f32 %v1493, %v1358
        %v1499 = vmul.f32 %v1494, %v1359
        %v1500 = vmul.f32 %v1495, %v1360
        %v1501 = vmul.f32 %v1496, 1.442695
        %v1502 = vpow.pop %v1501
        %v1503 = vmul.f32 %v1497, 1.442695
        %v1504 = vpow.pop %v1503
        %v1505 = vmul.f32 %v1498, 1.442695
        %v1506 = vpow.pop %v1505
        %v1507 = vmul.f32 %v1499, 1.442695
        %v1508 = vpow.pop %v1507
        %v1509 = vmul.f32 %v1500, 1.442695
        %v1510 = vpow.pop %v1509
        %v1511 = vmul.f32 %v1486, %v1502
        %v1512 = vmul.f32 %v1487, %v1504
        %v1513 = vmul.f32 %v1488, %v1506
        %v1514 = vmul.f32 %v1489, %v1508
        %v1515 = vmul.f32 %v1490, %v1510
        %v1516 = vsub.f32 1.0, %v1511
        %v1517 = vsub.f32 1.0, %v1512
        %v1518 = vsub.f32 1.0, %v1513
        %v1519 = vsub.f32 1.0, %v1514
        %v1520 = vsub.f32 1.0, %v1515
        %vm1521 = vcmp.ge.f32.partialorder %v1351, 0.0
        %vm1522 = vcmp.ge.f32.partialorder %v1352, 0.0
        %vm1523 = vcmp.ge.f32.partialorder %v1353, 0.0
        %vm1524 = vcmp.ge.f32.partialorder %v1354, 0.0
        %vm1525 = vcmp.ge.f32.partialorder %v1355, 0.0
        %v1526 = vsub.f32 0.0, %v1516
        %v1527 = vsub.f32 0.0, %v1517
        %v1528 = vsub.f32 0.0, %v1518
        %v1529 = vsub.f32 0.0, %v1519
        %v1530 = vsub.f32 0.0, %v1520
        %v1531 = vsel %vm1521, %v1516, %v1526
        %v1532 = vsel %vm1522, %v1517, %v1527
        %v1533 = vsel %vm1523, %v1518, %v1528
        %v1534 = vsel %vm1524, %v1519, %v1529
        %v1535 = vsel %vm1525, %v1520, %v1530
        %v1536 = vadd.f32 %v1531, 1.0
        %v1537 = vadd.f32 %v1532, 1.0
        %v1538 = vadd.f32 %v1533, 1.0
        %v1539 = vadd.f32 %v1534, 1.0
        %v1540 = vadd.f32 %v1535, 1.0
        %v1541 = vmul.f32 %v1346, %v1536
        %v1542 = vmul.f32 %v1347, %v1537
        %v1543 = vmul.f32 %v1348, %v1538
        %v1544 = vmul.f32 %v1349, %v1539
        %v1545 = vmul.f32 %v1350, %v1540
        %v1546 = vpack.c.bf16 %v1542, %v1541
        %v1547 = vpack.c.bf16 %v1544, %v1543
        %v1548 = vpack.c.bf16 %v1545, %v1545
        %v1549 = vld [vmem:[%s515] sm:$0xf]
        %v1550 = vld [vmem:[%s515 + $0x4] sm:$0xf]
        %v1551 = vld [vmem:[%s515 + $0x8] sm:$0xf]
        %v1552 = vld [vmem:[%s515 + $0xc] sm:$0xf]
        %v1553 = vld [vmem:[%s515 + $0x10] sm:$0xf]
        %v1554 = vld [vmem:[%s515 + $0x14] sm:$0xf]
        %v1555 = vld [vmem:[%s515 + $0x18] sm:$0xf]
        %v1556 = vld [vmem:[%s515 + $0x1c] sm:$0xf]
        %v1557 = vld [vmem:[%s520 + $0x6] sm:$0x1]
        %v1558 = vperm.slane %v1557, 0
        %v1567 = vunpack.c.l.b16 %v1549
        %v1568 = vunpack.c.l.b16 %v1550
        %v1569 = vunpack.c.l.b16 %v1551
        %v1570 = vunpack.c.l.b16 %v1552
        %v1571 = vunpack.c.l.b16 %v1553
        %v1572 = vunpack.c.l.b16 %v1554
        %v1573 = vunpack.c.l.b16 %v1555
        %v1574 = vunpack.c.l.b16 %v1556
        %v1575 = vpack.c.b16 %v1568, %v1567
        %v1576 = vpack.c.b16 %v1570, %v1569
        %v1577 = vpack.c.b16 %v1572, %v1571
        %v1578 = vpack.c.b16 %v1574, %v1573
        %vm1583 = vcmask 523264
        %v1585 = vsel %vm1583, %v1546, 0
        %v1588 = vsel %vm1583, %v1547, 0
        %v1591 = vsel %vm1583, %v1548, 0
        %1593 = vmatpush.bf16.msra.mxu0 0
        %1594 = vmatpush.bf16.msra.mxu0 0
        %1595 = vmatpush.bf16.msra.mxu0 0
        %1596 = vmatpush.bf16.msra.mxu0 0
        %1597 = vmatpush.bf16.msra.mxu0 %v1578
        %1598 = vmatpush.bf16.msra.mxu0 %v1577
        %1599 = vmatpush.bf16.msra.mxu0 %v1576
        %1600 = vmatpush.bf16.msra.mxu0 %v1575
        %1601 = vmatmul.bf16.gmra.mxu0 %v1585
        %v1602 = vpop.f32.mrf.mxu0
        %v1603 = vadd.f32 %v1558, %v1602
        %v1604 = vpop.f32.mrf.mxu0
        %v1605 = vadd.f32 %v1558, %v1604
        %1606 = vmatmul.bf16.gmra.mxu0 %v1588
        %v1607 = vpop.f32.mrf.mxu0
        %v1608 = vadd.f32 %v1558, %v1607
        %v1609 = vpop.f32.mrf.mxu0
        %v1610 = vadd.f32 %v1558, %v1609
        %1611 = vmatmul.bf16.gmra.mxu0 %v1591
        %v1612 = vpop.f32.mrf.mxu0
        %v1613 = vadd.f32 %v1558, %v1612
        %v1614 = vpop.f32.mrf.mxu0
        %1615 = vdwg.mxu0
        %v1616 = vadd.f32 %v1286, %v1603
        %v1617 = vadd.f32 %v1287, %v1605
        %v1618 = vadd.f32 %v1288, %v1608
        %v1619 = vadd.f32 %v1289, %v1610
        %v1620 = vadd.f32 %v1290, %v1613
        %v1621 = vld [vmem:[%s520 + $0x7] sm:$0x1]
        %v1622 = vld [vmem:[%s520 + $0x8] sm:$0x1]
        %v1623 = vsel %vm637, %v1616, 0.0
        %1624 = vadd.xlane.f32.xlu0 %v1623
        %v1625 = vpop.xlane.xlu0 %1624
        %v1626 = vsel %vm637, %v1617, 0.0
        %1627 = vadd.xlane.f32.xlu0 %v1626
        %v1628 = vpop.xlane.xlu0 %1627
        %v1629 = vsel %vm637, %v1618, 0.0
        %1630 = vadd.xlane.f32.xlu0 %v1629
        %v1631 = vpop.xlane.xlu0 %1630
        %v1632 = vsel %vm637, %v1619, 0.0
        %1633 = vadd.xlane.f32.xlu0 %v1632
        %v1634 = vpop.xlane.xlu0 %1633
        %v1635 = vsel %vm686, %v1620, 0.0
        %1636 = vadd.xlane.f32.xlu0 %v1635
        %v1637 = vpop.xlane.xlu0 %1636
        %v1638 = vmul.f32 %v1625, %v1183
        %v1639 = vmul.f32 %v1628, %v1183
        %v1640 = vmul.f32 %v1631, %v1183
        %v1641 = vmul.f32 %v1634, %v1183
        %v1642 = vmul.f32 %v1637, %v1183
        %v1643 = vsub.f32 %v1616, %v1638
        %v1644 = vsub.f32 %v1617, %v1639
        %v1645 = vsub.f32 %v1618, %v1640
        %v1646 = vsub.f32 %v1619, %v1641
        %v1647 = vsub.f32 %v1620, %v1642
        %v1648 = vmul.f32 %v1643, %v1643
        %v1649 = vmul.f32 %v1644, %v1644
        %v1650 = vmul.f32 %v1645, %v1645
        %v1651 = vmul.f32 %v1646, %v1646
        %v1652 = vmul.f32 %v1647, %v1647
        %v1653 = vsel %vm637, %v1648, 0.0
        %1654 = vadd.xlane.f32.xlu0 %v1653
        %v1655 = vpop.xlane.xlu0 %1654
        %v1656 = vsel %vm637, %v1649, 0.0
        %1657 = vadd.xlane.f32.xlu0 %v1656
        %v1658 = vpop.xlane.xlu0 %1657
        %v1659 = vsel %vm637, %v1650, 0.0
        %1660 = vadd.xlane.f32.xlu0 %v1659
        %v1661 = vpop.xlane.xlu0 %1660
        %v1662 = vsel %vm637, %v1651, 0.0
        %1663 = vadd.xlane.f32.xlu0 %v1662
        %v1664 = vpop.xlane.xlu0 %1663
        %v1665 = vsel %vm686, %v1652, 0.0
        %1666 = vadd.xlane.f32.xlu0 %v1665
        %v1667 = vpop.xlane.xlu0 %1666
        %v1668 = vmul.f32 %v1655, %v1183
        %v1669 = vmul.f32 %v1658, %v1183
        %v1670 = vmul.f32 %v1661, %v1183
        %v1671 = vmul.f32 %v1664, %v1183
        %v1672 = vmul.f32 %v1667, %v1183
        %v1673 = vadd.f32 %v1668, 1e-05
        %v1674 = vadd.f32 %v1669, 1e-05
        %v1675 = vadd.f32 %v1670, 1e-05
        %v1676 = vadd.f32 %v1671, 1e-05
        %v1677 = vadd.f32 %v1672, 1e-05
        %v1678 = vrsqrt.pop %v1673
        %v1679 = vmul.f32 %v1678, %v1673
        %v1680 = vmul.f32 %v1679, %v1678
        %v1681 = vmul.f32 0.5, %v1680
        %v1682 = vsub.f32 1.5, %v1681
        %v1683 = vmul.f32 %v1678, %v1682
        %vm1684 = vweird.f32 %v1673
        %vm1685 = vweird.f32 %v1678
        %vm1686 = vmor %vm1684, %vm1685
        %v1687 = vsel %vm1686, %v1678, %v1683
        %v1688 = vrsqrt.pop %v1674
        %v1689 = vmul.f32 %v1688, %v1674
        %v1690 = vmul.f32 %v1689, %v1688
        %v1691 = vmul.f32 0.5, %v1690
        %v1692 = vsub.f32 1.5, %v1691
        %v1693 = vmul.f32 %v1688, %v1692
        %vm1694 = vweird.f32 %v1674
        %vm1695 = vweird.f32 %v1688
        %vm1696 = vmor %vm1694, %vm1695
        %v1697 = vsel %vm1696, %v1688, %v1693
        %v1698 = vrsqrt.pop %v1675
        %v1699 = vmul.f32 %v1698, %v1675
        %v1700 = vmul.f32 %v1699, %v1698
        %v1701 = vmul.f32 0.5, %v1700
        %v1702 = vsub.f32 1.5, %v1701
        %v1703 = vmul.f32 %v1698, %v1702
        %vm1704 = vweird.f32 %v1675
        %vm1705 = vweird.f32 %v1698
        %vm1706 = vmor %vm1704, %vm1705
        %v1707 = vsel %vm1706, %v1698, %v1703
        %v1708 = vrsqrt.pop %v1676
        %v1709 = vmul.f32 %v1708, %v1676
        %v1710 = vmul.f32 %v1709, %v1708
        %v1711 = vmul.f32 0.5, %v1710
        %v1712 = vsub.f32 1.5, %v1711
        %v1713 = vmul.f32 %v1708, %v1712
        %vm1714 = vweird.f32 %v1676
        %vm1715 = vweird.f32 %v1708
        %vm1716 = vmor %vm1714, %vm1715
        %v1717 = vsel %vm1716, %v1708, %v1713
        %v1718 = vrsqrt.pop %v1677
        %v1719 = vmul.f32 %v1718, %v1677
        %v1720 = vmul.f32 %v1719, %v1718
        %v1721 = vmul.f32 0.5, %v1720
        %v1722 = vsub.f32 1.5, %v1721
        %v1723 = vmul.f32 %v1718, %v1722
        %vm1724 = vweird.f32 %v1677
        %vm1725 = vweird.f32 %v1718
        %vm1726 = vmor %vm1724, %vm1725
        %v1727 = vsel %vm1726, %v1718, %v1723
        %v1728 = vmul.f32 %v1643, %v1687
        %v1729 = vmul.f32 %v1644, %v1697
        %v1730 = vmul.f32 %v1645, %v1707
        %v1731 = vmul.f32 %v1646, %v1717
        %v1732 = vmul.f32 %v1647, %v1727
        %v1733 = vperm.slane %v1621, 0
        %v1734 = vmul.f32 %v1728, %v1733
        %v1735 = vmul.f32 %v1729, %v1733
        %v1736 = vmul.f32 %v1730, %v1733
        %v1737 = vmul.f32 %v1731, %v1733
        %v1738 = vmul.f32 %v1732, %v1733
        %v1739 = vperm.slane %v1622, 0
        %v1740 = vadd.f32 %v1734, %v1739
        %v1741 = vadd.f32 %v1735, %v1739
        %v1742 = vadd.f32 %v1736, %v1739
        %v1743 = vadd.f32 %v1737, %v1739
        %v1744 = vadd.f32 %v1738, %v1739
        %1745 = vst.msk [vmem:[#allocation2] sm:$0xff] %vm637, %v1740
        %1746 = vst.msk [vmem:[#allocation2 + $0x8] sm:$0xff] %vm637, %v1741
        %1747 = vst.msk [vmem:[#allocation2 + $0x10] sm:$0xff] %vm637, %v1742
        %1748 = vst.msk [vmem:[#allocation2 + $0x18] sm:$0xff] %vm637, %v1743
        %1749 = vst.msk [vmem:[#allocation2 + $0x20] sm:$0x3] %vm686, %v1744
        %p1750 = scmp.eq.s32.totalorder %s25, 1
        // Predicated region
        $region77: #{_lambda_.1} parent=71 // pred_check
          %p1751 = pneg %p1750
        $region78: #{_lambda_.1} parent=71 // pred_check_branch
          %1753 = sbr.rel (%p1751) target = $region80
        $region79: #{_lambda_.1} parent=71 // pred_region
          %v1754 = vlaneseq
          %v1755 = vand.u32 %v1754, 127
          %v1756 = vlaneseq
          %v1757 = vshrl.u32 %v1756, 7
          %v1758 = vmul.u32 %v1757, 17
          %vm1759 = vcmp.eq.s32.totalorder %v1755, %v1758
          %v1760 = vsel %vm1759, 1, 0
          %v1761 = vcvt.s32.f32 %v1760
          %vm1762 = vcmask 277504
          %v1764 = vsel %vm1762, %v1761, 0
          %vm1766 = vcmask 1041408
          %v1768 = vsel %vm1766, %v1744, 0
          %1770 = vmatpush.msra.mxu0 0.0
          %1771 = vmatpush.msra.mxu0 0.0
          %1772 = vmatpush.msra.mxu0 0.0
          %1773 = vmatpush.msra.mxu0 0.0
          %1774 = vmatpush.msra.mxu0 0.0
          %1775 = vmatpush.msra.mxu0 0.0
          %1776 = vmatpush.msra.mxu0 0.0
          %1777 = vmatpush.msra.mxu0 0.0
          %1778 = vmatpush.msra.mxu0 0.0
          %1779 = vmatpush.msra.mxu0 0.0
          %1780 = vmatpush.msra.mxu0 0.0
          %1781 = vmatpush.msra.mxu0 %v1768
          %1782 = vmatpush.msra.mxu0 %v1743
          %1783 = vmatpush.msra.mxu0 %v1742
          %1784 = vmatpush.msra.mxu0 %v1741
          %1785 = vmatpush.msra.mxu0 %v1740
          %1786 = vmatmul.f32.gmra.mxu0 %v1764
          %v1787 = vpop.f32.mrf.mxu0
          %v1788 = vadd.f32 0.0, %v1787
          %1789 = vdwg.mxu0
          %v1790 = vld [vmem:[%s4] sm:$0x1]
          %v1791 = vld [vmem:[%s4 + $0x1] sm:$0x1]
          %v1792 = vsel %vm686, %v1788, 0.0
          %1793 = vadd.xlane.f32.xlu0 %v1792
          %v1794 = vpop.xlane.xlu0 %1793
          %v1795 = vmul.f32 %v1794, %v1183
          %v1796 = vsub.f32 %v1788, %v1795
          %v1797 = vmul.f32 %v1796, %v1796
          %v1798 = vsel %vm686, %v1797, 0.0
          %1799 = vadd.xlane.f32.xlu0 %v1798
          %v1800 = vpop.xlane.xlu0 %1799
          %v1801 = vmul.f32 %v1800, %v1183
          %v1802 = vadd.f32 %v1801, 1e-05
          %v1803 = vrsqrt.pop %v1802
          %v1804 = vmul.f32 %v1803, %v1802
          %v1805 = vmul.f32 %v1804, %v1803
          %v1806 = vmul.f32 0.5, %v1805
          %v1807 = vsub.f32 1.5, %v1806
          %v1808 = vmul.f32 %v1803, %v1807
          %vm1809 = vweird.f32 %v1802
          %vm1810 = vweird.f32 %v1803
          %vm1811 = vmor %vm1809, %vm1810
          %v1812 = vsel %vm1811, %v1803, %v1808
          %v1813 = vmul.f32 %v1796, %v1812
          %v1814 = vperm.slane %v1790, 0
          %v1815 = vmul.f32 %v1813, %v1814
          %v1816 = vperm.slane %v1791, 0
          %v1817 = vadd.f32 %v1815, %v1816
          %v1818 = vpack.c.bf16 %v1817, %v1817
          %v1819 = vld [vmem:[%s5] sm:$0xf]
          %v1820 = vld [vmem:[%s5 + $0x4] sm:$0xf]
          %v1821 = vld [vmem:[%s5 + $0x8] sm:$0xf]
          %v1822 = vld [vmem:[%s5 + $0xc] sm:$0xf]
          %v1823 = vld [vmem:[%s6] sm:$0x1]
          %v1825 = vperm.slane %v1823, 0
          %v1831 = vunpack.c.l.b16 %v1819
          %v1832 = vunpack.c.l.b16 %v1820
          %v1833 = vunpack.c.l.b16 %v1821
          %v1834 = vunpack.c.l.b16 %v1822
          %v1835 = vpack.c.b16 %v1832, %v1831
          %v1836 = vpack.c.b16 %v1834, %v1833
          %v1840 = vsel %vm637, %v1818, 0
          %1842 = vmatpush.bf16.msra.mxu0 0
          %1843 = vmatpush.bf16.msra.mxu0 0
          %1844 = vmatpush.bf16.msra.mxu0 0
          %1845 = vmatpush.bf16.msra.mxu0 0
          %1846 = vmatpush.bf16.msra.mxu0 0
          %1847 = vmatpush.bf16.msra.mxu0 0
          %1848 = vmatpush.bf16.msra.mxu0 %v1836
          %1849 = vmatpush.bf16.msra.mxu0 %v1835
          %1850 = vmatmul.bf16.gmra.mxu0 %v1840
          %v1851 = vpop.f32.mrf.mxu0
          %v1852 = vadd.f32 %v1825, %v1851
          %v1853 = vpop.f32.mrf.mxu0
          %1854 = vdwg.mxu0
          %vm1855 = vcmask 58368
          %1856 = vst.msk [vmem:[#allocation6] sm:$0x3] %vm1855, %v1852
        $region80: #{_lambda_.1} parent=71 // pred_fallthru
          _
        // Predicated region
        $region81: #{_lambda_.1} parent=71 // pred_check
          %p1857 = pneg %p341
        $region82: #{_lambda_.1} parent=71 // pred_check_branch
          %1859 = sbr.rel (%p1857) target = $region84
        $region83: #{_lambda_.1} parent=71 // pred_region
          %1861 = vsyncadd [#allocation7], 0
          %s1863 = sshll.u32 [#allocation6], 4
          %s1864 = int_to_ptr.vmem [resolvable:$true] %s1863
          %s1865 = sshll.u32 %s13, 4
          %s1866 = int_to_ptr.hbm [resolvable:$true] %s1865
          %1868 = dma.vmem_to_hbm [thread:$0]  %s1864, 32, %s1866, [#allocation7]
        $region84: #{_lambda_.1} parent=71 // pred_fallthru
          _
        // Predicated region
        $region85: #{_lambda_.1} parent=71 // pred_check
          %p1869 = pneg %p341
        $region86: #{_lambda_.1} parent=71 // pred_check_branch
          %1871 = sbr.rel (%p1869) target = $region88
        $region87: #{_lambda_.1} parent=71 // pred_region
          %1873 = dma.done [#allocation7], 32
        $region88: #{_lambda_.1} parent=71 // pred_fallthru
          _
      $region72: #{_lambda_.1} parent=5 // pred_fallthru
        _
      %p1874 = scmp.le.s32.totalorder 2, %s20
      // Predicated region
      $region89: #{_lambda_.1} parent=5 // pred_check
        %p1875 = pneg %p1874
      $region90: #{_lambda_.1} parent=5 // pred_check_branch
        %1877 = sbr.rel (%p1875) target = $region92
      $region91: #{_lambda_.1} parent=5 // pred_region
        %s1878 = ssub.s32 %s20, 2
      $region92: #{_lambda_.1} parent=5 // pred_fallthru
        _
    $region6: #{_lambda_.1} parent=1 // loop_footer
      %s24 = sadd.s32 1, %s20
    $region7: #{_lambda_.1} parent=1 // loop_footer_branch
      %19 = sbr.rel target = $region3
    $region8: #{_lambda_.1} parent=1 // loop_exit
      _
    %1879 = vsyncpa [#allocation7], 1
    %s1880 = scalar_lea.sflag [#allocation7], 1
    %1881 = vsyncpa %s1880, 1

</llo_original>
